<compile_context>
chip_gen: v7x
topology: tpu7x:2x2x1
jax: 0.10.0
libtpu: 0.0.40
codegen_flags: <defaults>
</compile_context>

<pallas_src>
import jax
import jax.numpy as jnp
from jax.experimental import pallas as pl
from jax.experimental.pallas import tpu as pltpu


# ----------------------------------------------------------------------------
# Kernels
# ----------------------------------------------------------------------------
def _feature_kernel(hid_ref,     # (Bt, Sp, Hp) bf16 : BERT last_hidden_state tile
                    mask_ref,    # (Bt, Sp)     f32  : attention mask tile
                    vis_ref,     # (Bt, Hvp)    bf16 : CLIP vision pooled tile
                    wf_ref,      # (Hp, Pp)     bf16 : fused text projection
                    wv_ref,      # (Hvp, Pp)    bf16 : CLIP visual projection
                    scale_ref,   # (1, 1)       f32  : exp(logit_scale), hoisted
                    txt_ref,     # (Bt, Pp)     bf16 : normalized text features
                    img_ref):    # (Bt, Pp)     bf16 : normalized*scale image feats
    # ---- masked mean pooling (f32 on the VPU; v5e has no bf16 VPU/EUP) ----
    hid = hid_ref[...].astype(jnp.float32)                 # (Bt, Sp, Hp)
    mask = mask_ref[...]                                   # (Bt, Sp) f32
    msum = jnp.sum(mask, axis=1, keepdims=True)            # (Bt, 1)
    denom = jnp.maximum(msum, 1e-9)                        # clamp fully-masked rows
    pooled = jnp.sum(hid * mask[:, :, None], axis=1) / denom   # (Bt, Hp) f32
    # TODO(synk): at production sizes express this pooling as an MXU contraction
    # (einsum('bs,bsh->bh')) instead of a VPU multiply + cross-sublane reduce.

    # ---- fused text projection: (BERT hidden -> embed -> CLIP proj) in one dot ----
    txt = jnp.dot(pooled.astype(jnp.bfloat16), wf_ref[...],
                  preferred_element_type=jnp.float32)      # (Bt, Pp) f32
    # ---- CLIP visual projection ----
    img = jnp.dot(vis_ref[...], wv_ref[...],
                  preferred_element_type=jnp.float32)      # (Bt, Pp) f32

    # ---- L2 normalisation (f32, eps-clamped so zero/padded rows stay finite) ----
    txt_n = txt * jax.lax.rsqrt(
        jnp.maximum(jnp.sum(txt * txt, axis=-1, keepdims=True), 1e-24))
    img_n = img * jax.lax.rsqrt(
        jnp.maximum(jnp.sum(img * img, axis=-1, keepdims=True), 1e-24))

    # exp(logit_scale) is precomputed in the wrapper; fold into the (Bt, P)
    # image features rather than the (B, B) logits.
    img_n = img_n * scale_ref[0, 0]

    txt_ref[...] = txt_n.astype(txt_ref.dtype)
    img_ref[...] = img_n.astype(img_ref.dtype)


def _sim_kernel(a_ref,   # (Lt, Pp) bf16 : row block of A
                b_ref,   # (Lt, Pp) bf16 : row block of B
                o_ref):  # (Lt, Lt) f32  : A @ B^T block
    # A @ B^T expressed as a dot_general (contract last dims of both) so the MXU
    # handles the transposed contraction directly -- no XLU transpose and no
    # in-kernel lpt.T; the store is lane-dense (last dim = Lt = 128-multiple).
    o_ref[...] = jax.lax.dot_general(
        a_ref[...], b_ref[...],
        dimension_numbers=(((1,), (1,)), ((), ())),
        preferred_element_type=jnp.float32)


# ----------------------------------------------------------------------------
# Wrapper
# ----------------------------------------------------------------------------
def _round_up(n, m):
    return ((n + m - 1) // m) * m


def _pad_to(x, shape):
    pads = [(0, t - s) for s, t in zip(x.shape, shape)]
    if all(p == (0, 0) for p in pads):
        return x
    return jnp.pad(x, pads)


def _scaled_sim(a, b, *, logits_block=128):
    """Lane-dense (Bp, Bp) = A @ B^T over a 2-D parallel grid."""
    Bp, Pp = a.shape
    Lt = min(logits_block, Bp)
    assert Bp % Lt == 0
    grid = (Bp // Lt, Bp // Lt)
    return pl.pallas_call(
        _sim_kernel,
        out_shape=jax.ShapeDtypeStruct((Bp, Bp), jnp.float32),
        grid=grid,
        in_specs=[pl.BlockSpec((Lt, Pp), lambda i, j: (i, 0)),
                  pl.BlockSpec((Lt, Pp), lambda i, j: (j, 0))],
        out_specs=pl.BlockSpec((Lt, Lt), lambda i, j: (i, j)),
        compiler_params=pltpu.CompilerParams(
            dimension_semantics=("parallel", "parallel")),
    )(a, b)


def themo_model(last_hidden_state, attention_mask, vision_pooled,
                w_text_proj, w_clip_text_proj, w_clip_visual_proj, logit_scale,
                *, batch_block=64, logits_block=128):
    """Head of ThemoModel.forward downstream of the two backbones.

    batch_block: batch tile of the feature kernel.  Budget against VMEM:
    2 pipeline buffers x (batch_block, S, H) bf16 must fit comfortably; on v7x
    (64 MiB VMEM) use roughly half the v5e/v6e value at production S*H.
    """
    B, S, H = last_hidden_state.shape
    Hv = vision_pooled.shape[1]
    P = w_clip_visual_proj.shape[1]

    # ---- fold the two bias-free text projections into one (H, P) weight ----
    w_text_fused = (w_text_proj.astype(jnp.float32)
                    @ w_clip_text_proj.astype(jnp.float32))

    # ---- pad to lane/sublane-dense shapes (zeros are mathematically neutral) ----
    LANE, SUB = 128, 8
    Bp = _round_up(B, logits_block)     # B is the lane dim of the logits outputs
    Sp = _round_up(S, SUB)
    Hp = _round_up(H, LANE)
    Hvp = _round_up(Hv, LANE)
    Pp = _round_up(P, LANE)

    hid = _pad_to(last_hidden_state.astype(jnp.float32),
                  (Bp, Sp, Hp)).astype(jnp.bfloat16)        # bf16 halves HBM bytes
    mask = _pad_to(attention_mask.astype(jnp.float32), (Bp, Sp))
    vis = _pad_to(vision_pooled.astype(jnp.float32),
                  (Bp, Hvp)).astype(jnp.bfloat16)
    wf = _pad_to(w_text_fused, (Hp, Pp)).astype(jnp.bfloat16)
    wv = _pad_to(w_clip_visual_proj.astype(jnp.float32),
                 (Hvp, Pp)).astype(jnp.bfloat16)
    exp_scale = jnp.exp(logit_scale.astype(jnp.float32)).reshape(1, 1)

    Bt = min(batch_block, Bp)
    assert Bt % SUB == 0 and Bp % Bt == 0

    # ---- feature kernel: pooling + fused projections + L2 norm, tiled over B ----
    txt_n, img_ns = pl.pallas_call(
        _feature_kernel,
        out_shape=(jax.ShapeDtypeStruct((Bp, Pp), jnp.bfloat16),
                   jax.ShapeDtypeStruct((Bp, Pp), jnp.bfloat16)),
        grid=(Bp // Bt,),
        in_specs=[
            pl.BlockSpec((Bt, Sp, Hp), lambda i: (i, 0, 0)),
            pl.BlockSpec((Bt, Sp), lambda i: (i, 0)),
            pl.BlockSpec((Bt, Hvp), lambda i: (i, 0)),
            pl.BlockSpec((Hp, Pp), lambda i: (0, 0)),
            pl.BlockSpec((Hvp, Pp), lambda i: (0, 0)),
            pl.BlockSpec((1, 1), lambda i: (0, 0)),
        ],
        out_specs=(pl.BlockSpec((Bt, Pp), lambda i: (i, 0)),
                   pl.BlockSpec((Bt, Pp), lambda i: (i, 0))),
        compiler_params=pltpu.CompilerParams(
            dimension_semantics=("parallel",)),
    )(hid, mask, vis, wf, wv, exp_scale)

    # ---- scaled similarity logits (both directions as direct MXU matmuls) ----
    # forward() passes (image_features, text_features) into get_logits_per_text,
    # so logits_per_text == scale * norm(img) @ norm(txt).T  (faithful to module)
    lpt = _scaled_sim(img_ns, txt_n, logits_block=logits_block)
    lpi = _scaled_sim(txt_n, img_ns, logits_block=logits_block)   # == lpt.T
    return lpt[:B, :B], lpi[:B, :B]


# ----------------------------------------------------------------------------
# Demo / sanity check
# ----------------------------------------------------------------------------
if __name__ == "__main__":
    # Small, module-consistent shapes.
    B = 4          # batch (text batch == image batch)
    S = 8          # sequence length
    H = 32         # BERT hidden size (transformer_width)
    E = 32         # ThemoTextModel embed_dim == CLIP text hidden size
    HV = 32        # CLIP vision hidden size
    P = 16         # CLIP projection_dim
    VOCAB = 64

    key = jax.random.PRNGKey(0)
    ks = jax.random.split(key, 8)

    # ---- deterministic example inputs ----
    input_ids = jax.random.randint(ks[0], (B, S), 0, VOCAB, dtype=jnp.int32)
    pixel_values = jax.random.normal(ks[1], (B, 3, 16, 16), dtype=jnp.float32)  # NCHW
    attention_mask = jnp.concatenate(
        [jnp.ones((B, S - 2), jnp.float32), jnp.zeros((B, 2), jnp.float32)], axis=1)

    # ---- deterministic parameters ----
    # ThemoTextModel.projection: normal(std = hidden_size ** -0.5), stored (in, out)
    w_text_proj = jax.random.normal(ks[2], (H, E), jnp.float32) * (H ** -0.5)
    # CLIP projections (no bias), stored (in, out)
    w_clip_text_proj = jax.random.normal(ks[3], (E, P), jnp.float32) * 0.02
    w_clip_visual_proj = jax.random.normal(ks[4], (HV, P), jnp.float32) * 0.02
    # CLIP logit_scale initialised to log(1/0.07)
    logit_scale = jnp.array([jnp.log(1.0 / 0.07)], dtype=jnp.float32)

    # ---- light-weight deterministic backbone stand-ins (plain JAX glue) ----
    # TODO(synk): full pretrained BERT encoder not implemented; stand-in embedding
    # lookup produces last_hidden_state of shape (B, S, H).
    token_embed = jax.random.normal(ks[5], (VOCAB, H), jnp.float32) * 0.02
    last_hidden_state = token_embed[input_ids]                     # (B, S, H)

    # TODO(synk): full pretrained CLIP ViT not implemented; stand-in linear on
    # flattened pixels produces the vision pooled output of shape (B, HV).
    w_vis_embed = jax.random.normal(ks[6], (3 * 16 * 16, HV), jnp.float32) * 0.01
    vision_pooled = pixel_values.reshape(B, -1) @ w_vis_embed      # (B, HV)

    logits_per_text, logits_per_image = themo_model(
        last_hidden_state, attention_mask, vision_pooled,
        w_text_proj, w_clip_text_proj, w_clip_visual_proj, logit_scale)
    jax.block_until_ready((logits_per_text, logits_per_image))

    # quick sanity against a pure-f32 JAX reference of the original math.
    pooled = (last_hidden_state * attention_mask[:, :, None]).sum(1) / \
        attention_mask.sum(1, keepdims=True)
    txt = (pooled @ w_text_proj) @ w_clip_text_proj
    img = vision_pooled @ w_clip_visual_proj
    txt_n = txt / jnp.linalg.norm(txt, axis=-1, keepdims=True)
    img_n = img / jnp.linalg.norm(img, axis=-1, keepdims=True)
    ref_lpt = (img_n @ txt_n.T) * jnp.exp(logit_scale[0])

    # tolerance loosened because the kernel uses bf16 MXU operands (f32 accum);
    # logits have magnitude up to exp(log(1/0.07)) ~= 14.3.
    assert jnp.allclose(logits_per_text, ref_lpt, atol=5e-1, rtol=5e-2), \
        "logits_per_text mismatch"
    assert jnp.allclose(logits_per_image, ref_lpt.T, atol=5e-1, rtol=5e-2), \
        "logits_per_image mismatch"
    # the two kernel outputs must be exact transposes of each other
    assert jnp.allclose(logits_per_image, logits_per_text.T, atol=1e-5), \
        "logits_per_image != logits_per_text.T"

    print("KERNEL_OK")
</pallas_src>

<mosaic_0001>
module attributes {stable_mosaic.version = 11 : i64} {
  func.func @_feature_kernel(%arg0: i32, %arg1: memref<64x8x128xbf16, #tpu.memory_space<vmem>>, %arg2: memref<64x8xf32, #tpu.memory_space<vmem>>, %arg3: memref<64x128xbf16, #tpu.memory_space<vmem>>, %arg4: memref<128x128xbf16, #tpu.memory_space<vmem>>, %arg5: memref<128x128xbf16, #tpu.memory_space<vmem>>, %arg6: memref<1x1xf32, #tpu.memory_space<vmem>>, %arg7: memref<64x128xbf16, #tpu.memory_space<vmem>>, %arg8: memref<64x128xbf16, #tpu.memory_space<vmem>>) attributes {dimension_semantics = [#tpu.dimension_semantics<parallel>], iteration_bounds = array<i64: 2>, scalar_prefetch = 0 : i64, scratch_operands = 0 : i64, tpu.core_type = #tpu.core_type<tc>, window_params = [{transform_indices = @transform_0, window_bounds = array<i64: 64, 8, 128>}, {transform_indices = @transform_1, window_bounds = array<i64: 64, 8>}, {transform_indices = @transform_2, window_bounds = array<i64: 64, 128>}, {pipeline_mode = #tpu.pipeline_mode<synchronous>, transform_indices = @transform_3, window_bounds = array<i64: 128, 128>}, {pipeline_mode = #tpu.pipeline_mode<synchronous>, transform_indices = @transform_4, window_bounds = array<i64: 128, 128>}, {pipeline_mode = #tpu.pipeline_mode<synchronous>, transform_indices = @transform_5, window_bounds = array<i64: 1, 1>}, {transform_indices = @transform_6, window_bounds = array<i64: 64, 128>}, {transform_indices = @transform_7, window_bounds = array<i64: 64, 128>}]} {
    %c0 = arith.constant 0 : index
    %c0_0 = arith.constant 0 : index
    %c0_1 = arith.constant 0 : index
    %0 = vector.load %arg1[%c0, %c0_0, %c0_1] : memref<64x8x128xbf16, #tpu.memory_space<vmem>>, vector<64x8x128xbf16>
    %1 = arith.extf %0 : vector<64x8x128xbf16> to vector<64x8x128xf32>
    %c0_2 = arith.constant 0 : index
    %c0_3 = arith.constant 0 : index
    %2 = vector.load %arg2[%c0_2, %c0_3] : memref<64x8xf32, #tpu.memory_space<vmem>>, vector<64x8xf32>
    %cst = arith.constant dense<0.000000e+00> : vector<64xf32>
    %3 = vector.multi_reduction <add>, %2, %cst [1] : vector<64x8xf32> to vector<64xf32>
    %4 = vector.shape_cast %3 : vector<64xf32> to vector<64x1xf32>
    %cst_4 = arith.constant 9.99999971E-10 : f32
    %5 = vector.broadcast %cst_4 : f32 to vector<64x1xf32>
    %6 = arith.maximumf %4, %5 : vector<64x1xf32>
    %7 = vector.shape_cast %2 : vector<64x8xf32> to vector<64x8x1xf32>
    %8 = vector.broadcast %7 : vector<64x8x1xf32> to vector<64x8x128xf32>
    %9 = arith.mulf %1, %8 : vector<64x8x128xf32>
    %cst_5 = arith.constant dense<0.000000e+00> : vector<64x128xf32>
    %10 = vector.multi_reduction <add>, %9, %cst_5 [1] : vector<64x8x128xf32> to vector<64x128xf32>
    %11 = vector.broadcast %6 : vector<64x1xf32> to vector<64x128xf32>
    %12 = arith.divf %10, %11 : vector<64x128xf32>
    %13 = arith.truncf %12 : vector<64x128xf32> to vector<64x128xbf16>
    %c0_6 = arith.constant 0 : index
    %c0_7 = arith.constant 0 : index
    %14 = vector.load %arg4[%c0_6, %c0_7] : memref<128x128xbf16, #tpu.memory_space<vmem>>, vector<128x128xbf16>
    %cst_8 = arith.constant dense<0.000000e+00> : vector<64x128xf32>
    %15 = tpu.matmul %13, %14, %cst_8 {dimension_numbers = #tpu.dot_dimension_numbers<[1], [0], [0], [1], [0, 0, 1, 1], [], []>} : vector<64x128xbf16>, vector<128x128xbf16>, vector<64x128xf32> -> vector<64x128xf32>
    %c0_9 = arith.constant 0 : index
    %c0_10 = arith.constant 0 : index
    %16 = vector.load %arg3[%c0_9, %c0_10] : memref<64x128xbf16, #tpu.memory_space<vmem>>, vector<64x128xbf16>
    %c0_11 = arith.constant 0 : index
    %c0_12 = arith.constant 0 : index
    %17 = vector.load %arg5[%c0_11, %c0_12] : memref<128x128xbf16, #tpu.memory_space<vmem>>, vector<128x128xbf16>
    %cst_13 = arith.constant dense<0.000000e+00> : vector<64x128xf32>
    %18 = tpu.matmul %16, %17, %cst_13 {dimension_numbers = #tpu.dot_dimension_numbers<[1], [0], [0], [1], [0, 0, 1, 1], [], []>} : vector<64x128xbf16>, vector<128x128xbf16>, vector<64x128xf32> -> vector<64x128xf32>
    %19 = arith.mulf %15, %15 : vector<64x128xf32>
    %cst_14 = arith.constant dense<0.000000e+00> : vector<64xf32>
    %20 = vector.multi_reduction <add>, %19, %cst_14 [1] : vector<64x128xf32> to vector<64xf32>
    %21 = vector.shape_cast %20 : vector<64xf32> to vector<64x1xf32>
    %cst_15 = arith.constant 1.000000e-24 : f32
    %22 = vector.broadcast %cst_15 : f32 to vector<64x1xf32>
    %23 = arith.maximumf %21, %22 : vector<64x1xf32>
    %24 = math.rsqrt %23 : vector<64x1xf32>
    %25 = vector.broadcast %24 : vector<64x1xf32> to vector<64x128xf32>
    %26 = arith.mulf %15, %25 : vector<64x128xf32>
    %27 = arith.mulf %18, %18 : vector<64x128xf32>
    %cst_16 = arith.constant dense<0.000000e+00> : vector<64xf32>
    %28 = vector.multi_reduction <add>, %27, %cst_16 [1] : vector<64x128xf32> to vector<64xf32>
    %29 = vector.shape_cast %28 : vector<64xf32> to vector<64x1xf32>
    %cst_17 = arith.constant 1.000000e-24 : f32
    %30 = vector.broadcast %cst_17 : f32 to vector<64x1xf32>
    %31 = arith.maximumf %29, %30 : vector<64x1xf32>
    %32 = math.rsqrt %31 : vector<64x1xf32>
    %33 = vector.broadcast %32 : vector<64x1xf32> to vector<64x128xf32>
    %34 = arith.mulf %18, %33 : vector<64x128xf32>
    %c0_18 = arith.constant 0 : index
    %c0_19 = arith.constant 0 : index
    %35 = vector.load %arg6[%c0_18, %c0_19] : memref<1x1xf32, #tpu.memory_space<vmem>>, vector<1x1xf32>
    %36 = vector.extract %35[0, 0] : f32 from vector<1x1xf32>
    %37 = vector.broadcast %36 : f32 to vector<64x128xf32>
    %38 = arith.mulf %34, %37 : vector<64x128xf32>
    %39 = arith.truncf %26 : vector<64x128xf32> to vector<64x128xbf16>
    %c0_20 = arith.constant 0 : index
    %c0_21 = arith.constant 0 : index
    %40 = vector.load %arg7[%c0_20, %c0_21] : memref<64x128xbf16, #tpu.memory_space<vmem>>, vector<64x128xbf16>
    tpu.vector_store %arg7[%c0_20, %c0_21], %39 {strides = array<i32>} : memref<64x128xbf16, #tpu.memory_space<vmem>>, vector<64x128xbf16>,
    %41 = arith.truncf %38 : vector<64x128xf32> to vector<64x128xbf16>
    %c0_22 = arith.constant 0 : index
    %c0_23 = arith.constant 0 : index
    %42 = vector.load %arg8[%c0_22, %c0_23] : memref<64x128xbf16, #tpu.memory_space<vmem>>, vector<64x128xbf16>
    tpu.vector_store %arg8[%c0_22, %c0_23], %41 {strides = array<i32>} : memref<64x128xbf16, #tpu.memory_space<vmem>>, vector<64x128xbf16>,
    return
  }
  func.func @transform_0(%arg0: i32) -> (i32, i32, i32) {
    %c0_i32 = arith.constant 0 : i32
    %c0_i32_0 = arith.constant 0 : i32
    %c0_i32_1 = arith.constant 0 : i32
    return %arg0, %c0_i32, %c0_i32_0 : i32, i32, i32
  }
  func.func @transform_1(%arg0: i32) -> (i32, i32) {
    %c0_i32 = arith.constant 0 : i32
    %c0_i32_0 = arith.constant 0 : i32
    return %arg0, %c0_i32 : i32, i32
  }
  func.func @transform_2(%arg0: i32) -> (i32, i32) {
    %c0_i32 = arith.constant 0 : i32
    %c0_i32_0 = arith.constant 0 : i32
    return %arg0, %c0_i32 : i32, i32
  }
  func.func @transform_3(%arg0: i32) -> (i32, i32) {
    %c0_i32 = arith.constant 0 : i32
    %c0_i32_0 = arith.constant 0 : i32
    %c0_i32_1 = arith.constant 0 : i32
    return %c0_i32, %c0_i32_0 : i32, i32
  }
  func.func @transform_4(%arg0: i32) -> (i32, i32) {
    %c0_i32 = arith.constant 0 : i32
    %c0_i32_0 = arith.constant 0 : i32
    %c0_i32_1 = arith.constant 0 : i32
    return %c0_i32, %c0_i32_0 : i32, i32
  }
  func.func @transform_5(%arg0: i32) -> (i32, i32) {
    %c0_i32 = arith.constant 0 : i32
    %c0_i32_0 = arith.constant 0 : i32
    %c0_i32_1 = arith.constant 0 : i32
    return %c0_i32, %c0_i32_0 : i32, i32
  }
  func.func @transform_6(%arg0: i32) -> (i32, i32) {
    %c0_i32 = arith.constant 0 : i32
    %c0_i32_0 = arith.constant 0 : i32
    return %arg0, %c0_i32 : i32, i32
  }
  func.func @transform_7(%arg0: i32) -> (i32, i32) {
    %c0_i32 = arith.constant 0 : i32
    %c0_i32_0 = arith.constant 0 : i32
    return %arg0, %c0_i32 : i32, i32
  }
}

</mosaic_0001>

<llo_original>
// kernel: tpu_custom_call.1
$region0: #{tpu_custom_call.1}
  #allocation0 [shape = 'u32[]', space=smem, size = 0x4, offset = 0x4, fixed_abs, tag = 'smem constant byte address 0x4 - core index']
  #allocation1 [shape = 'u32[144,128]{1,0:T(1,128)}', space=vmem, size = 0x12000, scoped, tag = 'internal scratch']
  #allocation2 [shape = 'f32[1,1]{1,0:T(1,128)S(1)}', space=vmem, size = 0x200, scoped, tag = 'scoped memory for tpu_custom_call.1']
  %s0 = inlined_call_operand.hbm [shape: bf16[128,8,128], index: 0, kind: input, shape index: {}]
  %s1 = inlined_call_operand.vmem [shape: f32[128,8], index: 1, kind: input, shape index: {}]
  %s2 = inlined_call_operand.vmem [shape: bf16[128,128], index: 2, kind: input, shape index: {}]
  %s3 = inlined_call_operand.vmem [shape: bf16[128,128], index: 3, kind: input, shape index: {}]
  %s4 = inlined_call_operand.hbm [shape: bf16[128,128], index: 4, kind: input, shape index: {}]
  %s5 = inlined_call_operand.<no memory space> [shape: f32[1,1], index: 5, kind: input, shape index: {}]
  %s6 = inlined_call_operand.hbm [shape: bf16[128,128], index: 6, kind: output, shape index: {0}]
  %s7 = inlined_call_operand.hbm [shape: bf16[128,128], index: 7, kind: output, shape index: {1}]
  %8 = xla_tuple %s6, %s7
  %s9 = sld [smem:[#allocation0]]
  $region73: #{tpu_custom_call.1} parent=0
    _
  %s11 = ssub.s32 1, %s9
  %s12 = scalar_select 0, %s11, %s9
  %v13 = vstv %s5
  %14 = vst [vmem:[#allocation2] sm:$0x1] %v13
  $region1: #{tpu_custom_call.1} parent=0
    #allocation3 [shape = 'u8[262144]{0}', space=vmem, size = 0x40000, scoped, tag = 'input window, operand 0']
    #allocation4 [shape = 's32[2]{0}', space=sflag, size = 0x8, scoped, tag = 'scoped memory for tpu_custom_call.1']
    #allocation5 [shape = 's32[2]{0}', space=sflag, size = 0x8, scoped, tag = 'scoped memory for tpu_custom_call.1']
    #allocation6 [shape = 'u8[32768]{0}', space=vmem, size = 0x8000, scoped, tag = 'input window, operand 4, single buffered']
    #allocation7 [shape = 's32[1]{0}', space=sflag, size = 0x4, scoped, tag = 'scoped memory for tpu_custom_call.1']
    #allocation8 [shape = 'u8[32768]{0}', space=vmem, size = 0x8000, scoped, tag = 'output window, operand 0']
    #allocation9 [shape = 'u8[32768]{0}', space=vmem, size = 0x8000, scoped, tag = 'output window, operand 1']
    #allocation10 [shape = 's32[2]{0}', space=sflag, size = 0x8, scoped, tag = 'scoped memory for tpu_custom_call.1']
    %15 = vsyncpa [#allocation4], 0
    %s16 = scalar_lea.sflag [#allocation4], 1
    %17 = vsyncpa %s16, 0
    %18 = vsyncpa [#allocation7], 0
    %19 = vsyncpa [#allocation5], 0
    %s20 = scalar_lea.sflag [#allocation5], 1
    %21 = vsyncpa %s20, 0
    %22 = vsyncpa [#allocation10], 0
    %s23 = scalar_lea.sflag [#allocation10], 1
    %24 = vsyncpa %s23, 0
    loop: start=0, step=1, limit=4
    $region2: #{tpu_custom_call.1} parent=1 // loop_pre_header
      _
    $region3: #{tpu_custom_call.1} parent=1 // loop_header
      %s26 = sphi 0, %s30
      %p27 = scmp.ge.s32.totalorder %s26, 4
      %s36 = sphi 0, %s38
      %s39 = sphi 0, %s36
      %s40 = sphi 0, %s39
      %s56 = sphi 0, %s40
      %s62 = sphi 0, %s64
      %s65 = sphi 0, %s62
      %s66 = sphi 0, %s65
      %s82 = sphi 0, %s66
      %s88 = sphi 0, %s90
      %s91 = sphi 0, %s88
      %s92 = sphi 0, %s91
      %s108 = sphi 0, %s92
      %s112 = sphi 0, %s112
      %s114 = sphi 0, %s112
      %s115 = sphi 0, %s114
      %s129 = sphi 0, %s115
      %s133 = sphi 0, %s133
      %s135 = sphi 0, %s133
      %s136 = sphi 0, %s135
      %s150 = sphi 0, %s136
      %s154 = sphi 0, %s154
      %s156 = sphi 0, %s154
      %s157 = sphi 0, %s156
      %s171 = sphi 0, %s157
      %s177 = sphi 0, %s179
      %s180 = sphi 0, %s177
      %s181 = sphi 0, %s180
      %s197 = sphi 0, %s181
      %s203 = sphi 0, %s205
      %s206 = sphi 0, %s203
      %s207 = sphi 0, %s206
      %s223 = sphi 0, %s207
    $region4: #{tpu_custom_call.1} parent=1 // loop_header_branch
      %29 = sbr.rel (%p27) target = $region8
    $region5: #{tpu_custom_call.1} parent=1 // loop_body
      %s31 = ssub.s32 %s26, 1
      %s32 = ssub.s32 %s26, 2
      %s33 = sadd.s32 %s26, 1
      %s34 = ssub.s32 %s26, %s33
      %p35 = scmp.eq.s32.totalorder %s34, 0
      %s37 = sadd.s32 %s36, 1
      %s38 = scalar_select %p35, %s36, %s37
      %p41 = pneg %p35
      %p42 = scmp.eq.s32.totalorder %s26, 1
      %p43 = por %p41, %p42
      %p44 = scmp.ne.s32.totalorder %s36, %s39
      %p45 = scmp.eq.s32.totalorder %s26, 0
      %p46 = por %p44, %p45
      %p47 = scmp.ne.s32.totalorder %s36, %s39
      %p48 = scmp.eq.s32.totalorder %s31, 1
      %p49 = por %p47, %p48
      %p50 = scmp.ne.s32.totalorder %s39, %s40
      %p51 = scmp.eq.s32.totalorder %s31, 0
      %p52 = por %p50, %p51
      %p53 = scmp.ne.s32.totalorder %s39, %s40
      %p54 = scmp.eq.s32.totalorder %s32, 1
      %p55 = por %p53, %p54
      %p57 = scmp.ne.s32.totalorder %s40, %s56
      %p58 = scmp.eq.s32.totalorder %s32, 0
      %p59 = por %p57, %p58
      %s60 = ssub.s32 %s26, %s33
      %p61 = scmp.eq.s32.totalorder %s60, 0
      %s63 = sadd.s32 %s62, 1
      %s64 = scalar_select %p61, %s62, %s63
      %p67 = pneg %p61
      %p68 = scmp.eq.s32.totalorder %s26, 1
      %p69 = por %p67, %p68
      %p70 = scmp.ne.s32.totalorder %s62, %s65
      %p71 = scmp.eq.s32.totalorder %s26, 0
      %p72 = por %p70, %p71
      %p73 = scmp.ne.s32.totalorder %s62, %s65
      %p74 = scmp.eq.s32.totalorder %s31, 1
      %p75 = por %p73, %p74
      %p76 = scmp.ne.s32.totalorder %s65, %s66
      %p77 = scmp.eq.s32.totalorder %s31, 0
      %p78 = por %p76, %p77
      %p79 = scmp.ne.s32.totalorder %s65, %s66
      %p80 = scmp.eq.s32.totalorder %s32, 1
      %p81 = por %p79, %p80
      %p83 = scmp.ne.s32.totalorder %s66, %s82
      %p84 = scmp.eq.s32.totalorder %s32, 0
      %p85 = por %p83, %p84
      %s86 = ssub.s32 %s26, %s33
      %p87 = scmp.eq.s32.totalorder %s86, 0
      %s89 = sadd.s32 %s88, 1
      %s90 = scalar_select %p87, %s88, %s89
      %p93 = pneg %p87
      %p94 = scmp.eq.s32.totalorder %s26, 1
      %p95 = por %p93, %p94
      %p96 = scmp.ne.s32.totalorder %s88, %s91
      %p97 = scmp.eq.s32.totalorder %s26, 0
      %p98 = por %p96, %p97
      %p99 = scmp.ne.s32.totalorder %s88, %s91
      %p100 = scmp.eq.s32.totalorder %s31, 1
      %p101 = por %p99, %p100
      %p102 = scmp.ne.s32.totalorder %s91, %s92
      %p103 = scmp.eq.s32.totalorder %s31, 0
      %p104 = por %p102, %p103
      %p105 = scmp.ne.s32.totalorder %s91, %s92
      %p106 = scmp.eq.s32.totalorder %s32, 1
      %p107 = por %p105, %p106
      %p109 = scmp.ne.s32.totalorder %s92, %s108
      %p110 = scmp.eq.s32.totalorder %s32, 0
      %p111 = por %p109, %p110
      %s113 = sadd.s32 %s112, 1
      %p116 = scmp.eq.s32.totalorder %s26, 1
      %p117 = scmp.ne.s32.totalorder %s112, %s114
      %p118 = scmp.eq.s32.totalorder %s26, 0
      %p119 = por %p117, %p118
      %p120 = scmp.ne.s32.totalorder %s112, %s114
      %p121 = scmp.eq.s32.totalorder %s31, 1
      %p122 = por %p120, %p121
      %p123 = scmp.ne.s32.totalorder %s114, %s115
      %p124 = scmp.eq.s32.totalorder %s31, 0
      %p125 = por %p123, %p124
      %p126 = scmp.ne.s32.totalorder %s114, %s115
      %p127 = scmp.eq.s32.totalorder %s32, 1
      %p128 = por %p126, %p127
      %p130 = scmp.ne.s32.totalorder %s115, %s129
      %p131 = scmp.eq.s32.totalorder %s32, 0
      %p132 = por %p130, %p131
      %s134 = sadd.s32 %s133, 1
      %p137 = scmp.eq.s32.totalorder %s26, 1
      %p138 = scmp.ne.s32.totalorder %s133, %s135
      %p139 = scmp.eq.s32.totalorder %s26, 0
      %p140 = por %p138, %p139
      %p141 = scmp.ne.s32.totalorder %s133, %s135
      %p142 = scmp.eq.s32.totalorder %s31, 1
      %p143 = por %p141, %p142
      %p144 = scmp.ne.s32.totalorder %s135, %s136
      %p145 = scmp.eq.s32.totalorder %s31, 0
      %p146 = por %p144, %p145
      %p147 = scmp.ne.s32.totalorder %s135, %s136
      %p148 = scmp.eq.s32.totalorder %s32, 1
      %p149 = por %p147, %p148
      %p151 = scmp.ne.s32.totalorder %s136, %s150
      %p152 = scmp.eq.s32.totalorder %s32, 0
      %p153 = por %p151, %p152
      %s155 = sadd.s32 %s154, 1
      %p158 = scmp.eq.s32.totalorder %s26, 1
      %p159 = scmp.ne.s32.totalorder %s154, %s156
      %p160 = scmp.eq.s32.totalorder %s26, 0
      %p161 = por %p159, %p160
      %p162 = scmp.ne.s32.totalorder %s154, %s156
      %p163 = scmp.eq.s32.totalorder %s31, 1
      %p164 = por %p162, %p163
      %p165 = scmp.ne.s32.totalorder %s156, %s157
      %p166 = scmp.eq.s32.totalorder %s31, 0
      %p167 = por %p165, %p166
      %p168 = scmp.ne.s32.totalorder %s156, %s157
      %p169 = scmp.eq.s32.totalorder %s32, 1
      %p170 = por %p168, %p169
      %p172 = scmp.ne.s32.totalorder %s157, %s171
      %p173 = scmp.eq.s32.totalorder %s32, 0
      %p174 = por %p172, %p173
      %s175 = ssub.s32 %s26, %s33
      %p176 = scmp.eq.s32.totalorder %s175, 0
      %s178 = sadd.s32 %s177, 1
      %s179 = scalar_select %p176, %s177, %s178
      %p182 = pneg %p176
      %p183 = scmp.eq.s32.totalorder %s26, 1
      %p184 = por %p182, %p183
      %p185 = scmp.ne.s32.totalorder %s177, %s180
      %p186 = scmp.eq.s32.totalorder %s26, 0
      %p187 = por %p185, %p186
      %p188 = scmp.ne.s32.totalorder %s177, %s180
      %p189 = scmp.eq.s32.totalorder %s31, 1
      %p190 = por %p188, %p189
      %p191 = scmp.ne.s32.totalorder %s180, %s181
      %p192 = scmp.eq.s32.totalorder %s31, 0
      %p193 = por %p191, %p192
      %p194 = scmp.ne.s32.totalorder %s180, %s181
      %p195 = scmp.eq.s32.totalorder %s32, 1
      %p196 = por %p194, %p195
      %p198 = scmp.ne.s32.totalorder %s181, %s197
      %p199 = scmp.eq.s32.totalorder %s32, 0
      %p200 = por %p198, %p199
      %s201 = ssub.s32 %s26, %s33
      %p202 = scmp.eq.s32.totalorder %s201, 0
      %s204 = sadd.s32 %s203, 1
      %s205 = scalar_select %p202, %s203, %s204
      %p208 = pneg %p202
      %p209 = scmp.eq.s32.totalorder %s26, 1
      %p210 = por %p208, %p209
      %p211 = scmp.ne.s32.totalorder %s203, %s206
      %p212 = scmp.eq.s32.totalorder %s26, 0
      %p213 = por %p211, %p212
      %p214 = scmp.ne.s32.totalorder %s203, %s206
      %p215 = scmp.eq.s32.totalorder %s31, 1
      %p216 = por %p214, %p215
      %p217 = scmp.ne.s32.totalorder %s206, %s207
      %p218 = scmp.eq.s32.totalorder %s31, 0
      %p219 = por %p217, %p218
      %p220 = scmp.ne.s32.totalorder %s206, %s207
      %p221 = scmp.eq.s32.totalorder %s32, 1
      %p222 = por %p220, %p221
      %p224 = scmp.ne.s32.totalorder %s207, %s223
      %p225 = scmp.eq.s32.totalorder %s32, 0
      %p226 = por %p224, %p225
      %p227 = scmp.le.s32.totalorder 1, %s26
      %p228 = scmp.lt.s32.totalorder %s26, 3
      %p229 = pnand %p227, %p228
      %p230 = pneg %p229
      // Predicated region
      $region9: #{tpu_custom_call.1} parent=5 // pred_check
        _
      $region10: #{tpu_custom_call.1} parent=5 // pred_check_branch
        %232 = sbr.rel (%p229) target = $region12
      $region11: #{tpu_custom_call.1} parent=5 // pred_region
        %s233 = ssub.s32 %s26, 1
        // Predicated region
        $region13: #{tpu_custom_call.1} parent=11 // pred_check
          %p234 = pneg %p125
        $region14: #{tpu_custom_call.1} parent=11 // pred_check_branch
          %236 = sbr.rel (%p234) target = $region16
        $region15: #{tpu_custom_call.1} parent=11 // pred_region
          _
        $region16: #{tpu_custom_call.1} parent=11 // pred_fallthru
          _
        // Predicated region
        $region17: #{tpu_custom_call.1} parent=11 // pred_check
          %p237 = pneg %p146
        $region18: #{tpu_custom_call.1} parent=11 // pred_check_branch
          %239 = sbr.rel (%p237) target = $region20
        $region19: #{tpu_custom_call.1} parent=11 // pred_region
          %s241 = ssub.s32 1024, 1024
          %242 = vsyncadd [#allocation7], %s241
          %s243 = sshll.u32 [#allocation6], 4
          %s244 = int_to_ptr.vmem [resolvable:$true] %s243
          %249 = dma.hbm_to_vmem [thread:$0]  %s4, 1024, %s244, [#allocation7], 64, 64, 4
        $region20: #{tpu_custom_call.1} parent=11 // pred_fallthru
          _
        // Predicated region
        $region21: #{tpu_custom_call.1} parent=11 // pred_check
          %p250 = pneg %p167
        $region22: #{tpu_custom_call.1} parent=11 // pred_check_branch
          %252 = sbr.rel (%p250) target = $region24
        $region23: #{tpu_custom_call.1} parent=11 // pred_region
          _
        $region24: #{tpu_custom_call.1} parent=11 // pred_fallthru
          _
      $region12: #{tpu_custom_call.1} parent=5 // pred_fallthru
        _
      %p253 = scmp.lt.s32.totalorder %s26, 2
      // Predicated region
      $region25: #{tpu_custom_call.1} parent=5 // pred_check
        %p254 = pneg %p253
      $region26: #{tpu_custom_call.1} parent=5 // pred_check_branch
        %256 = sbr.rel (%p254) target = $region28
      $region27: #{tpu_custom_call.1} parent=5 // pred_region
        // Predicated region
        $region29: #{tpu_custom_call.1} parent=27 // pred_check
          %p257 = pneg %p46
        $region30: #{tpu_custom_call.1} parent=27 // pred_check_branch
          %259 = sbr.rel (%p257) target = $region32
        $region31: #{tpu_custom_call.1} parent=27 // pred_region
          %s260 = sand.u32 %s36, 1
          %s261 = scalar_lea.sflag [#allocation4], %s260
          %s262 = sand.u32 %s36, 1
          %s263 = smul.addr %s262, 256
          %s264 = scalar_lea.vmem [#allocation3], %s263
          %s265 = smul.u32 64, %s26
          %s267 = ssub.s32 4096, 4096
          %268 = vsyncadd %s261, %s267
          %s269 = smul.addr %s265, 64
          %s270 = scalar_lea.hbm %s0, %s269
          %s271 = sshll.u32 %s264, 4
          %s272 = int_to_ptr.vmem [resolvable:$true] %s271
          %277 = dma.hbm_to_vmem [thread:$0]  %s270, 4096, %s272, %s261, 64, 64, 4
        $region32: #{tpu_custom_call.1} parent=27 // pred_fallthru
          _
        // Predicated region
        $region33: #{tpu_custom_call.1} parent=27 // pred_check
          %p278 = pneg %p72
        $region34: #{tpu_custom_call.1} parent=27 // pred_check_branch
          %280 = sbr.rel (%p278) target = $region36
        $region35: #{tpu_custom_call.1} parent=27 // pred_region
          %s281 = smul.u32 8, %s26
          %p282 = scmp.lt.s32.totalorder %s281, 15
          %s283 = scalar_select %p282, %s281, 15
          %s284 = smul.addr %s283, 8
          %s285 = scalar_lea.vmem %s1, %s284
          %s286 = smul.u32 8, %s26
        $region36: #{tpu_custom_call.1} parent=27 // pred_fallthru
          _
        // Predicated region
        $region37: #{tpu_custom_call.1} parent=27 // pred_check
          %p287 = pneg %p98
        $region38: #{tpu_custom_call.1} parent=27 // pred_check_branch
          %289 = sbr.rel (%p287) target = $region40
        $region39: #{tpu_custom_call.1} parent=27 // pred_region
          %s290 = smul.u32 8, %s26
          %p291 = scmp.lt.s32.totalorder %s290, 15
          %s292 = scalar_select %p291, %s290, 15
          %s293 = smul.addr %s292, 4
          %s294 = scalar_lea.vmem %s2, %s293
          %s295 = smul.u32 8, %s26
        $region40: #{tpu_custom_call.1} parent=27 // pred_fallthru
          _
      $region28: #{tpu_custom_call.1} parent=5 // pred_fallthru
        _
      %p296 = scmp.le.s32.totalorder 1, %s26
      %p297 = scmp.lt.s32.totalorder %s26, 3
      %p298 = pnand %p296, %p297
      %p299 = pneg %p298
      // Predicated region
      $region41: #{tpu_custom_call.1} parent=5 // pred_check
        _
      $region42: #{tpu_custom_call.1} parent=5 // pred_check_branch
        %301 = sbr.rel (%p298) target = $region44
      $region43: #{tpu_custom_call.1} parent=5 // pred_region
        %s302 = ssub.s32 %s26, 1
        %s303 = sand.u32 %s39, 1
        %s304 = scalar_lea.sflag [#allocation4], %s303
        %s305 = sand.u32 %s39, 1
        %s306 = smul.addr %s305, 256
        %s307 = scalar_lea.vmem [#allocation3], %s306
        // Predicated region
        $region45: #{tpu_custom_call.1} parent=43 // pred_check
          %p308 = pneg %p52
        $region46: #{tpu_custom_call.1} parent=43 // pred_check_branch
          %310 = sbr.rel (%p308) target = $region48
        $region47: #{tpu_custom_call.1} parent=43 // pred_region
          %311 = dma.done %s304, 4096
        $region48: #{tpu_custom_call.1} parent=43 // pred_fallthru
          _
        // Predicated region
        $region49: #{tpu_custom_call.1} parent=43 // pred_check
          %p312 = pneg %p146
        $region50: #{tpu_custom_call.1} parent=43 // pred_check_branch
          %314 = sbr.rel (%p312) target = $region52
        $region51: #{tpu_custom_call.1} parent=43 // pred_region
          %315 = dma.done [#allocation7], 1024
        $region52: #{tpu_custom_call.1} parent=43 // pred_fallthru
          _
        %s316 = sand.u32 %s39, 1
        %s317 = scalar_lea.sflag [#allocation4], %s316
        %s318 = sand.u32 %s39, 1
        %s319 = smul.addr %s318, 256
        %s320 = scalar_lea.vmem [#allocation3], %s319
        %p321 = pneg %p52
        %p322 = pneg %p49
        %s323 = smul.u32 8, %s31
        %p324 = scmp.lt.s32.totalorder %s323, 15
        %s325 = scalar_select %p324, %s323, 15
        %s326 = smul.addr %s325, 8
        %s327 = scalar_lea.vmem %s1, %s326
        %p328 = pneg %p78
        %p329 = pneg %p75
        %s330 = smul.u32 8, %s31
        %p331 = scmp.lt.s32.totalorder %s330, 15
        %s332 = scalar_select %p331, %s330, 15
        %s333 = smul.addr %s332, 4
        %s334 = scalar_lea.vmem %s2, %s333
        %p335 = pneg %p104
        %p336 = pneg %p101
        %p337 = pneg %p125
        %p338 = pneg %p122
        %p339 = pneg %p146
        %p340 = pneg %p143
        %p341 = pneg %p167
        %p342 = pneg %p164
        %p343 = pneg %p193
        %p344 = pneg %p190
        %s345 = sand.u32 %s180, 1
        %s346 = scalar_lea.sflag [#allocation5], %s345
        %s347 = sand.u32 %s180, 1
        %s348 = smul.addr %s347, 32
        %s349 = scalar_lea.vmem [#allocation8], %s348
        %p350 = pneg %p219
        %p351 = pneg %p216
        %s352 = sand.u32 %s206, 1
        %s353 = scalar_lea.sflag [#allocation10], %s352
        %s354 = sand.u32 %s206, 1
        %s355 = smul.addr %s354, 32
        %s356 = scalar_lea.vmem [#allocation9], %s355
        %s357 = smul.u32 64, %s31
        %s358 = smul.u32 8, %s31
        %p359 = scmp.lt.s32.totalorder %s358, 15
        %s360 = scalar_select %p359, %s358, 15
        %s361 = smul.addr %s360, 8
        %s362 = scalar_lea.vmem %s1, %s361
        %s363 = smul.u32 8, %s31
        %s364 = smul.u32 8, %s31
        %p365 = scmp.lt.s32.totalorder %s364, 15
        %s366 = scalar_select %p365, %s364, 15
        %s367 = smul.addr %s366, 4
        %s368 = scalar_lea.vmem %s2, %s367
        %s369 = smul.u32 8, %s31
        %s370 = smul.u32 8, %s31
        %s371 = smul.u32 8, %s31
        %v373 = vld [vmem:[%s307] sm:$0xf]
        %v374 = vld [vmem:[%s307 + $0x4] sm:$0xf]
        %v375 = vld [vmem:[%s307 + $0x8] sm:$0xf]
        %v376 = vld [vmem:[%s307 + $0xc] sm:$0xf]
        %v377 = vld [vmem:[%s307 + $0x10] sm:$0xf]
        %v378 = vld [vmem:[%s307 + $0x14] sm:$0xf]
        %v379 = vld [vmem:[%s307 + $0x18] sm:$0xf]
        %v380 = vld [vmem:[%s307 + $0x1c] sm:$0xf]
        %v381 = vld [vmem:[%s307 + $0x20] sm:$0xf]
        %v382 = vld [vmem:[%s307 + $0x24] sm:$0xf]
        %v383 = vld [vmem:[%s307 + $0x28] sm:$0xf]
        %v384 = vld [vmem:[%s307 + $0x2c] sm:$0xf]
        %v385 = vld [vmem:[%s307 + $0x30] sm:$0xf]
        %v386 = vld [vmem:[%s307 + $0x34] sm:$0xf]
        %v387 = vld [vmem:[%s307 + $0x38] sm:$0xf]
        %v388 = vld [vmem:[%s307 + $0x3c] sm:$0xf]
        %v389 = vld [vmem:[%s307 + $0x40] sm:$0xf]
        %v390 = vld [vmem:[%s307 + $0x44] sm:$0xf]
        %v391 = vld [vmem:[%s307 + $0x48] sm:$0xf]
        %v392 = vld [vmem:[%s307 + $0x4c] sm:$0xf]
        %v393 = vld [vmem:[%s307 + $0x50] sm:$0xf]
        %v394 = vld [vmem:[%s307 + $0x54] sm:$0xf]
        %v395 = vld [vmem:[%s307 + $0x58] sm:$0xf]
        %v396 = vld [vmem:[%s307 + $0x5c] sm:$0xf]
        %v397 = vld [vmem:[%s307 + $0x60] sm:$0xf]
        %v398 = vld [vmem:[%s307 + $0x64] sm:$0xf]
        %v399 = vld [vmem:[%s307 + $0x68] sm:$0xf]
        %v400 = vld [vmem:[%s307 + $0x6c] sm:$0xf]
        %v401 = vld [vmem:[%s307 + $0x70] sm:$0xf]
        %v402 = vld [vmem:[%s307 + $0x74] sm:$0xf]
        %v403 = vld [vmem:[%s307 + $0x78] sm:$0xf]
        %v404 = vld [vmem:[%s307 + $0x7c] sm:$0xf]
        %v405 = vld [vmem:[%s307 + $0x80] sm:$0xf]
        %v406 = vld [vmem:[%s307 + $0x84] sm:$0xf]
        %v407 = vld [vmem:[%s307 + $0x88] sm:$0xf]
        %v408 = vld [vmem:[%s307 + $0x8c] sm:$0xf]
        %v409 = vld [vmem:[%s307 + $0x90] sm:$0xf]
        %v410 = vld [vmem:[%s307 + $0x94] sm:$0xf]
        %v411 = vld [vmem:[%s307 + $0x98] sm:$0xf]
        %v412 = vld [vmem:[%s307 + $0x9c] sm:$0xf]
        %v413 = vld [vmem:[%s307 + $0xa0] sm:$0xf]
        %v414 = vld [vmem:[%s307 + $0xa4] sm:$0xf]
        %v415 = vld [vmem:[%s307 + $0xa8] sm:$0xf]
        %v416 = vld [vmem:[%s307 + $0xac] sm:$0xf]
        %v417 = vld [vmem:[%s307 + $0xb0] sm:$0xf]
        %v418 = vld [vmem:[%s307 + $0xb4] sm:$0xf]
        %v419 = vld [vmem:[%s307 + $0xb8] sm:$0xf]
        %v420 = vld [vmem:[%s307 + $0xbc] sm:$0xf]
        %v421 = vld [vmem:[%s307 + $0xc0] sm:$0xf]
        %v422 = vld [vmem:[%s307 + $0xc4] sm:$0xf]
        %v423 = vld [vmem:[%s307 + $0xc8] sm:$0xf]
        %v424 = vld [vmem:[%s307 + $0xcc] sm:$0xf]
        %v425 = vld [vmem:[%s307 + $0xd0] sm:$0xf]
        %v426 = vld [vmem:[%s307 + $0xd4] sm:$0xf]
        %v427 = vld [vmem:[%s307 + $0xd8] sm:$0xf]
        %v428 = vld [vmem:[%s307 + $0xdc] sm:$0xf]
        %v429 = vld [vmem:[%s307 + $0xe0] sm:$0xf]
        %v430 = vld [vmem:[%s307 + $0xe4] sm:$0xf]
        %v431 = vld [vmem:[%s307 + $0xe8] sm:$0xf]
        %v432 = vld [vmem:[%s307 + $0xec] sm:$0xf]
        %v433 = vld [vmem:[%s307 + $0xf0] sm:$0xf]
        %v434 = vld [vmem:[%s307 + $0xf4] sm:$0xf]
        %v435 = vld [vmem:[%s307 + $0xf8] sm:$0xf]
        %v436 = vld [vmem:[%s307 + $0xfc] sm:$0xf]
        %v437 = vunpack.c.l.bf16 %v373
        %v438 = vunpack.c.l.bf16 %v374
        %v439 = vunpack.c.l.bf16 %v375
        %v440 = vunpack.c.l.bf16 %v376
        %v441 = vunpack.c.l.bf16 %v377
        %v442 = vunpack.c.l.bf16 %v378
        %v443 = vunpack.c.l.bf16 %v379
        %v444 = vunpack.c.l.bf16 %v380
        %v445 = vunpack.c.l.bf16 %v381
        %v446 = vunpack.c.l.bf16 %v382
        %v447 = vunpack.c.l.bf16 %v383
        %v448 = vunpack.c.l.bf16 %v384
        %v449 = vunpack.c.l.bf16 %v385
        %v450 = vunpack.c.l.bf16 %v386
        %v451 = vunpack.c.l.bf16 %v387
        %v452 = vunpack.c.l.bf16 %v388
        %v453 = vunpack.c.l.bf16 %v389
        %v454 = vunpack.c.l.bf16 %v390
        %v455 = vunpack.c.l.bf16 %v391
        %v456 = vunpack.c.l.bf16 %v392
        %v457 = vunpack.c.l.bf16 %v393
        %v458 = vunpack.c.l.bf16 %v394
        %v459 = vunpack.c.l.bf16 %v395
        %v460 = vunpack.c.l.bf16 %v396
        %v461 = vunpack.c.l.bf16 %v397
        %v462 = vunpack.c.l.bf16 %v398
        %v463 = vunpack.c.l.bf16 %v399
        %v464 = vunpack.c.l.bf16 %v400
        %v465 = vunpack.c.l.bf16 %v401
        %v466 = vunpack.c.l.bf16 %v402
        %v467 = vunpack.c.l.bf16 %v403
        %v468 = vunpack.c.l.bf16 %v404
        %v469 = vunpack.c.l.bf16 %v405
        %v470 = vunpack.c.l.bf16 %v406
        %v471 = vunpack.c.l.bf16 %v407
        %v472 = vunpack.c.l.bf16 %v408
        %v473 = vunpack.c.l.bf16 %v409
        %v474 = vunpack.c.l.bf16 %v410
        %v475 = vunpack.c.l.bf16 %v411
        %v476 = vunpack.c.l.bf16 %v412
        %v477 = vunpack.c.l.bf16 %v413
        %v478 = vunpack.c.l.bf16 %v414
        %v479 = vunpack.c.l.bf16 %v415
        %v480 = vunpack.c.l.bf16 %v416
        %v481 = vunpack.c.l.bf16 %v417
        %v482 = vunpack.c.l.bf16 %v418
        %v483 = vunpack.c.l.bf16 %v419
        %v484 = vunpack.c.l.bf16 %v420
        %v485 = vunpack.c.l.bf16 %v421
        %v486 = vunpack.c.l.bf16 %v422
        %v487 = vunpack.c.l.bf16 %v423
        %v488 = vunpack.c.l.bf16 %v424
        %v489 = vunpack.c.l.bf16 %v425
        %v490 = vunpack.c.l.bf16 %v426
        %v491 = vunpack.c.l.bf16 %v427
        %v492 = vunpack.c.l.bf16 %v428
        %v493 = vunpack.c.l.bf16 %v429
        %v494 = vunpack.c.l.bf16 %v430
        %v495 = vunpack.c.l.bf16 %v431
        %v496 = vunpack.c.l.bf16 %v432
        %v497 = vunpack.c.l.bf16 %v433
        %v498 = vunpack.c.l.bf16 %v434
        %v499 = vunpack.c.l.bf16 %v435
        %v500 = vunpack.c.l.bf16 %v436
        %v501 = vld [vmem:[%s362] sm:$0xff]
        %v502 = vld [vmem:[%s362 + $0x8] sm:$0xff]
        %v503 = vld [vmem:[%s362 + $0x10] sm:$0xff]
        %v504 = vld [vmem:[%s362 + $0x18] sm:$0xff]
        %v505 = vld [vmem:[%s362 + $0x20] sm:$0xff]
        %v506 = vld [vmem:[%s362 + $0x28] sm:$0xff]
        %v507 = vld [vmem:[%s362 + $0x30] sm:$0xff]
        %v508 = vld [vmem:[%s362 + $0x38] sm:$0xff]
        %vm509 = vcmask 64512
        %v510 = vsel %vm509, %v501, 0.0
        %511 = vadd.xlane.f32.xlu0 %v510
        %v512 = vpop.xlane.xlu0 %511
        %v513 = vsel %vm509, %v502, 0.0
        %514 = vadd.xlane.f32.xlu0 %v513
        %v515 = vpop.xlane.xlu0 %514
        %v516 = vsel %vm509, %v503, 0.0
        %517 = vadd.xlane.f32.xlu0 %v516
        %v518 = vpop.xlane.xlu0 %517
        %v519 = vsel %vm509, %v504, 0.0
        %520 = vadd.xlane.f32.xlu0 %v519
        %v521 = vpop.xlane.xlu0 %520
        %v522 = vsel %vm509, %v505, 0.0
        %523 = vadd.xlane.f32.xlu0 %v522
        %v524 = vpop.xlane.xlu0 %523
        %v525 = vsel %vm509, %v506, 0.0
        %526 = vadd.xlane.f32.xlu0 %v525
        %v527 = vpop.xlane.xlu0 %526
        %v528 = vsel %vm509, %v507, 0.0
        %529 = vadd.xlane.f32.xlu0 %v528
        %v530 = vpop.xlane.xlu0 %529
        %v531 = vsel %vm509, %v508, 0.0
        %532 = vadd.xlane.f32.xlu0 %v531
        %v533 = vpop.xlane.xlu0 %532
        %v534 = vmax.f32 %v512, 1e-09
        %v535 = vmax.f32 %v515, 1e-09
        %v536 = vmax.f32 %v518, 1e-09
        %v537 = vmax.f32 %v521, 1e-09
        %v538 = vmax.f32 %v524, 1e-09
        %v539 = vmax.f32 %v527, 1e-09
        %v540 = vmax.f32 %v530, 1e-09
        %v541 = vmax.f32 %v533, 1e-09
        %v542 = vlaneseq
        %v543 = vshrl.u32 %v542, 7
        %v544 = vsub.s32 0, %v543
        %v545 = vrot.slane %v501, %v544
        %547 = vbcast.lane.b32.xlu0 %v545, 256
        %v548 = vpop.permute.xlu0 %547
        %v549 = vlaneseq
        %v550 = vshrl.u32 %v549, 7
        %v551 = vsub.s32 1, %v550
        %v552 = vrot.slane %v501, %v551
        %554 = vbcast.lane.b32.xlu0 %v552, 256
        %v555 = vpop.permute.xlu0 %554
        %v556 = vlaneseq
        %v557 = vshrl.u32 %v556, 7
        %v558 = vsub.s32 2, %v557
        %v559 = vrot.slane %v501, %v558
        %561 = vbcast.lane.b32.xlu0 %v559, 256
        %v562 = vpop.permute.xlu0 %561
        %v563 = vlaneseq
        %v564 = vshrl.u32 %v563, 7
        %v565 = vsub.s32 3, %v564
        %v566 = vrot.slane %v501, %v565
        %568 = vbcast.lane.b32.xlu0 %v566, 256
        %v569 = vpop.permute.xlu0 %568
        %v570 = vlaneseq
        %v571 = vshrl.u32 %v570, 7
        %v572 = vsub.s32 4, %v571
        %v573 = vrot.slane %v501, %v572
        %575 = vbcast.lane.b32.xlu0 %v573, 256
        %v576 = vpop.permute.xlu0 %575
        %v577 = vlaneseq
        %v578 = vshrl.u32 %v577, 7
        %v579 = vsub.s32 5, %v578
        %v580 = vrot.slane %v501, %v579
        %582 = vbcast.lane.b32.xlu0 %v580, 256
        %v583 = vpop.permute.xlu0 %582
        %v584 = vlaneseq
        %v585 = vshrl.u32 %v584, 7
        %v586 = vsub.s32 6, %v585
        %v587 = vrot.slane %v501, %v586
        %589 = vbcast.lane.b32.xlu0 %v587, 256
        %v590 = vpop.permute.xlu0 %589
        %v591 = vlaneseq
        %v592 = vshrl.u32 %v591, 7
        %v593 = vsub.s32 7, %v592
        %v594 = vrot.slane %v501, %v593
        %596 = vbcast.lane.b32.xlu0 %v594, 256
        %v597 = vpop.permute.xlu0 %596
        %v598 = vlaneseq
        %v599 = vshrl.u32 %v598, 7
        %v600 = vsub.s32 0, %v599
        %v601 = vrot.slane %v502, %v600
        %603 = vbcast.lane.b32.xlu0 %v601, 256
        %v604 = vpop.permute.xlu0 %603
        %v605 = vlaneseq
        %v606 = vshrl.u32 %v605, 7
        %v607 = vsub.s32 1, %v606
        %v608 = vrot.slane %v502, %v607
        %610 = vbcast.lane.b32.xlu0 %v608, 256
        %v611 = vpop.permute.xlu0 %610
        %v612 = vlaneseq
        %v613 = vshrl.u32 %v612, 7
        %v614 = vsub.s32 2, %v613
        %v615 = vrot.slane %v502, %v614
        %617 = vbcast.lane.b32.xlu0 %v615, 256
        %v618 = vpop.permute.xlu0 %617
        %v619 = vlaneseq
        %v620 = vshrl.u32 %v619, 7
        %v621 = vsub.s32 3, %v620
        %v622 = vrot.slane %v502, %v621
        %624 = vbcast.lane.b32.xlu0 %v622, 256
        %v625 = vpop.permute.xlu0 %624
        %v626 = vlaneseq
        %v627 = vshrl.u32 %v626, 7
        %v628 = vsub.s32 4, %v627
        %v629 = vrot.slane %v502, %v628
        %631 = vbcast.lane.b32.xlu0 %v629, 256
        %v632 = vpop.permute.xlu0 %631
        %v633 = vlaneseq
        %v634 = vshrl.u32 %v633, 7
        %v635 = vsub.s32 5, %v634
        %v636 = vrot.slane %v502, %v635
        %638 = vbcast.lane.b32.xlu0 %v636, 256
        %v639 = vpop.permute.xlu0 %638
        %v640 = vlaneseq
        %v641 = vshrl.u32 %v640, 7
        %v642 = vsub.s32 6, %v641
        %v643 = vrot.slane %v502, %v642
        %645 = vbcast.lane.b32.xlu0 %v643, 256
        %v646 = vpop.permute.xlu0 %645
        %v647 = vlaneseq
        %v648 = vshrl.u32 %v647, 7
        %v649 = vsub.s32 7, %v648
        %v650 = vrot.slane %v502, %v649
        %652 = vbcast.lane.b32.xlu0 %v650, 256
        %v653 = vpop.permute.xlu0 %652
        %v654 = vlaneseq
        %v655 = vshrl.u32 %v654, 7
        %v656 = vsub.s32 0, %v655
        %v657 = vrot.slane %v503, %v656
        %659 = vbcast.lane.b32.xlu0 %v657, 256
        %v660 = vpop.permute.xlu0 %659
        %v661 = vlaneseq
        %v662 = vshrl.u32 %v661, 7
        %v663 = vsub.s32 1, %v662
        %v664 = vrot.slane %v503, %v663
        %666 = vbcast.lane.b32.xlu0 %v664, 256
        %v667 = vpop.permute.xlu0 %666
        %v668 = vlaneseq
        %v669 = vshrl.u32 %v668, 7
        %v670 = vsub.s32 2, %v669
        %v671 = vrot.slane %v503, %v670
        %673 = vbcast.lane.b32.xlu0 %v671, 256
        %v674 = vpop.permute.xlu0 %673
        %v675 = vlaneseq
        %v676 = vshrl.u32 %v675, 7
        %v677 = vsub.s32 3, %v676
        %v678 = vrot.slane %v503, %v677
        %680 = vbcast.lane.b32.xlu0 %v678, 256
        %v681 = vpop.permute.xlu0 %680
        %v682 = vlaneseq
        %v683 = vshrl.u32 %v682, 7
        %v684 = vsub.s32 4, %v683
        %v685 = vrot.slane %v503, %v684
        %687 = vbcast.lane.b32.xlu0 %v685, 256
        %v688 = vpop.permute.xlu0 %687
        %v689 = vlaneseq
        %v690 = vshrl.u32 %v689, 7
        %v691 = vsub.s32 5, %v690
        %v692 = vrot.slane %v503, %v691
        %694 = vbcast.lane.b32.xlu0 %v692, 256
        %v695 = vpop.permute.xlu0 %694
        %v696 = vlaneseq
        %v697 = vshrl.u32 %v696, 7
        %v698 = vsub.s32 6, %v697
        %v699 = vrot.slane %v503, %v698
        %701 = vbcast.lane.b32.xlu0 %v699, 256
        %v702 = vpop.permute.xlu0 %701
        %v703 = vlaneseq
        %v704 = vshrl.u32 %v703, 7
        %v705 = vsub.s32 7, %v704
        %v706 = vrot.slane %v503, %v705
        %708 = vbcast.lane.b32.xlu0 %v706, 256
        %v709 = vpop.permute.xlu0 %708
        %v710 = vlaneseq
        %v711 = vshrl.u32 %v710, 7
        %v712 = vsub.s32 0, %v711
        %v713 = vrot.slane %v504, %v712
        %715 = vbcast.lane.b32.xlu0 %v713, 256
        %v716 = vpop.permute.xlu0 %715
        %v717 = vlaneseq
        %v718 = vshrl.u32 %v717, 7
        %v719 = vsub.s32 1, %v718
        %v720 = vrot.slane %v504, %v719
        %722 = vbcast.lane.b32.xlu0 %v720, 256
        %v723 = vpop.permute.xlu0 %722
        %v724 = vlaneseq
        %v725 = vshrl.u32 %v724, 7
        %v726 = vsub.s32 2, %v725
        %v727 = vrot.slane %v504, %v726
        %729 = vbcast.lane.b32.xlu0 %v727, 256
        %v730 = vpop.permute.xlu0 %729
        %v731 = vlaneseq
        %v732 = vshrl.u32 %v731, 7
        %v733 = vsub.s32 3, %v732
        %v734 = vrot.slane %v504, %v733
        %736 = vbcast.lane.b32.xlu0 %v734, 256
        %v737 = vpop.permute.xlu0 %736
        %v738 = vlaneseq
        %v739 = vshrl.u32 %v738, 7
        %v740 = vsub.s32 4, %v739
        %v741 = vrot.slane %v504, %v740
        %743 = vbcast.lane.b32.xlu0 %v741, 256
        %v744 = vpop.permute.xlu0 %743
        %v745 = vlaneseq
        %v746 = vshrl.u32 %v745, 7
        %v747 = vsub.s32 5, %v746
        %v748 = vrot.slane %v504, %v747
        %750 = vbcast.lane.b32.xlu0 %v748, 256
        %v751 = vpop.permute.xlu0 %750
        %v752 = vlaneseq
        %v753 = vshrl.u32 %v752, 7
        %v754 = vsub.s32 6, %v753
        %v755 = vrot.slane %v504, %v754
        %757 = vbcast.lane.b32.xlu0 %v755, 256
        %v758 = vpop.permute.xlu0 %757
        %v759 = vlaneseq
        %v760 = vshrl.u32 %v759, 7
        %v761 = vsub.s32 7, %v760
        %v762 = vrot.slane %v504, %v761
        %764 = vbcast.lane.b32.xlu0 %v762, 256
        %v765 = vpop.permute.xlu0 %764
        %v766 = vlaneseq
        %v767 = vshrl.u32 %v766, 7
        %v768 = vsub.s32 0, %v767
        %v769 = vrot.slane %v505, %v768
        %771 = vbcast.lane.b32.xlu0 %v769, 256
        %v772 = vpop.permute.xlu0 %771
        %v773 = vlaneseq
        %v774 = vshrl.u32 %v773, 7
        %v775 = vsub.s32 1, %v774
        %v776 = vrot.slane %v505, %v775
        %778 = vbcast.lane.b32.xlu0 %v776, 256
        %v779 = vpop.permute.xlu0 %778
        %v780 = vlaneseq
        %v781 = vshrl.u32 %v780, 7
        %v782 = vsub.s32 2, %v781
        %v783 = vrot.slane %v505, %v782
        %785 = vbcast.lane.b32.xlu0 %v783, 256
        %v786 = vpop.permute.xlu0 %785
        %v787 = vlaneseq
        %v788 = vshrl.u32 %v787, 7
        %v789 = vsub.s32 3, %v788
        %v790 = vrot.slane %v505, %v789
        %792 = vbcast.lane.b32.xlu0 %v790, 256
        %v793 = vpop.permute.xlu0 %792
        %v794 = vlaneseq
        %v795 = vshrl.u32 %v794, 7
        %v796 = vsub.s32 4, %v795
        %v797 = vrot.slane %v505, %v796
        %799 = vbcast.lane.b32.xlu0 %v797, 256
        %v800 = vpop.permute.xlu0 %799
        %v801 = vlaneseq
        %v802 = vshrl.u32 %v801, 7
        %v803 = vsub.s32 5, %v802
        %v804 = vrot.slane %v505, %v803
        %806 = vbcast.lane.b32.xlu0 %v804, 256
        %v807 = vpop.permute.xlu0 %806
        %v808 = vlaneseq
        %v809 = vshrl.u32 %v808, 7
        %v810 = vsub.s32 6, %v809
        %v811 = vrot.slane %v505, %v810
        %813 = vbcast.lane.b32.xlu0 %v811, 256
        %v814 = vpop.permute.xlu0 %813
        %v815 = vlaneseq
        %v816 = vshrl.u32 %v815, 7
        %v817 = vsub.s32 7, %v816
        %v818 = vrot.slane %v505, %v817
        %820 = vbcast.lane.b32.xlu0 %v818, 256
        %v821 = vpop.permute.xlu0 %820
        %v822 = vlaneseq
        %v823 = vshrl.u32 %v822, 7
        %v824 = vsub.s32 0, %v823
        %v825 = vrot.slane %v506, %v824
        %827 = vbcast.lane.b32.xlu0 %v825, 256
        %v828 = vpop.permute.xlu0 %827
        %v829 = vlaneseq
        %v830 = vshrl.u32 %v829, 7
        %v831 = vsub.s32 1, %v830
        %v832 = vrot.slane %v506, %v831
        %834 = vbcast.lane.b32.xlu0 %v832, 256
        %v835 = vpop.permute.xlu0 %834
        %v836 = vlaneseq
        %v837 = vshrl.u32 %v836, 7
        %v838 = vsub.s32 2, %v837
        %v839 = vrot.slane %v506, %v838
        %841 = vbcast.lane.b32.xlu0 %v839, 256
        %v842 = vpop.permute.xlu0 %841
        %v843 = vlaneseq
        %v844 = vshrl.u32 %v843, 7
        %v845 = vsub.s32 3, %v844
        %v846 = vrot.slane %v506, %v845
        %848 = vbcast.lane.b32.xlu0 %v846, 256
        %v849 = vpop.permute.xlu0 %848
        %v850 = vlaneseq
        %v851 = vshrl.u32 %v850, 7
        %v852 = vsub.s32 4, %v851
        %v853 = vrot.slane %v506, %v852
        %855 = vbcast.lane.b32.xlu0 %v853, 256
        %v856 = vpop.permute.xlu0 %855
        %v857 = vlaneseq
        %v858 = vshrl.u32 %v857, 7
        %v859 = vsub.s32 5, %v858
        %v860 = vrot.slane %v506, %v859
        %862 = vbcast.lane.b32.xlu0 %v860, 256
        %v863 = vpop.permute.xlu0 %862
        %v864 = vlaneseq
        %v865 = vshrl.u32 %v864, 7
        %v866 = vsub.s32 6, %v865
        %v867 = vrot.slane %v506, %v866
        %869 = vbcast.lane.b32.xlu0 %v867, 256
        %v870 = vpop.permute.xlu0 %869
        %v871 = vlaneseq
        %v872 = vshrl.u32 %v871, 7
        %v873 = vsub.s32 7, %v872
        %v874 = vrot.slane %v506, %v873
        %876 = vbcast.lane.b32.xlu0 %v874, 256
        %v877 = vpop.permute.xlu0 %876
        %v878 = vlaneseq
        %v879 = vshrl.u32 %v878, 7
        %v880 = vsub.s32 0, %v879
        %v881 = vrot.slane %v507, %v880
        %883 = vbcast.lane.b32.xlu0 %v881, 256
        %v884 = vpop.permute.xlu0 %883
        %v885 = vlaneseq
        %v886 = vshrl.u32 %v885, 7
        %v887 = vsub.s32 1, %v886
        %v888 = vrot.slane %v507, %v887
        %890 = vbcast.lane.b32.xlu0 %v888, 256
        %v891 = vpop.permute.xlu0 %890
        %v892 = vlaneseq
        %v893 = vshrl.u32 %v892, 7
        %v894 = vsub.s32 2, %v893
        %v895 = vrot.slane %v507, %v894
        %897 = vbcast.lane.b32.xlu0 %v895, 256
        %v898 = vpop.permute.xlu0 %897
        %v899 = vlaneseq
        %v900 = vshrl.u32 %v899, 7
        %v901 = vsub.s32 3, %v900
        %v902 = vrot.slane %v507, %v901
        %904 = vbcast.lane.b32.xlu0 %v902, 256
        %v905 = vpop.permute.xlu0 %904
        %v906 = vlaneseq
        %v907 = vshrl.u32 %v906, 7
        %v908 = vsub.s32 4, %v907
        %v909 = vrot.slane %v507, %v908
        %911 = vbcast.lane.b32.xlu0 %v909, 256
        %v912 = vpop.permute.xlu0 %911
        %v913 = vlaneseq
        %v914 = vshrl.u32 %v913, 7
        %v915 = vsub.s32 5, %v914
        %v916 = vrot.slane %v507, %v915
        %918 = vbcast.lane.b32.xlu0 %v916, 256
        %v919 = vpop.permute.xlu0 %918
        %v920 = vlaneseq
        %v921 = vshrl.u32 %v920, 7
        %v922 = vsub.s32 6, %v921
        %v923 = vrot.slane %v507, %v922
        %925 = vbcast.lane.b32.xlu0 %v923, 256
        %v926 = vpop.permute.xlu0 %925
        %v927 = vlaneseq
        %v928 = vshrl.u32 %v927, 7
        %v929 = vsub.s32 7, %v928
        %v930 = vrot.slane %v507, %v929
        %932 = vbcast.lane.b32.xlu0 %v930, 256
        %v933 = vpop.permute.xlu0 %932
        %v934 = vlaneseq
        %v935 = vshrl.u32 %v934, 7
        %v936 = vsub.s32 0, %v935
        %v937 = vrot.slane %v508, %v936
        %939 = vbcast.lane.b32.xlu0 %v937, 256
        %v940 = vpop.permute.xlu0 %939
        %v941 = vlaneseq
        %v942 = vshrl.u32 %v941, 7
        %v943 = vsub.s32 1, %v942
        %v944 = vrot.slane %v508, %v943
        %946 = vbcast.lane.b32.xlu0 %v944, 256
        %v947 = vpop.permute.xlu0 %946
        %v948 = vlaneseq
        %v949 = vshrl.u32 %v948, 7
        %v950 = vsub.s32 2, %v949
        %v951 = vrot.slane %v508, %v950
        %953 = vbcast.lane.b32.xlu0 %v951, 256
        %v954 = vpop.permute.xlu0 %953
        %v955 = vlaneseq
        %v956 = vshrl.u32 %v955, 7
        %v957 = vsub.s32 3, %v956
        %v958 = vrot.slane %v508, %v957
        %960 = vbcast.lane.b32.xlu0 %v958, 256
        %v961 = vpop.permute.xlu0 %960
        %v962 = vlaneseq
        %v963 = vshrl.u32 %v962, 7
        %v964 = vsub.s32 4, %v963
        %v965 = vrot.slane %v508, %v964
        %967 = vbcast.lane.b32.xlu0 %v965, 256
        %v968 = vpop.permute.xlu0 %967
        %v969 = vlaneseq
        %v970 = vshrl.u32 %v969, 7
        %v971 = vsub.s32 5, %v970
        %v972 = vrot.slane %v508, %v971
        %974 = vbcast.lane.b32.xlu0 %v972, 256
        %v975 = vpop.permute.xlu0 %974
        %v976 = vlaneseq
        %v977 = vshrl.u32 %v976, 7
        %v978 = vsub.s32 6, %v977
        %v979 = vrot.slane %v508, %v978
        %981 = vbcast.lane.b32.xlu0 %v979, 256
        %v982 = vpop.permute.xlu0 %981
        %v983 = vlaneseq
        %v984 = vshrl.u32 %v983, 7
        %v985 = vsub.s32 7, %v984
        %v986 = vrot.slane %v508, %v985
        %988 = vbcast.lane.b32.xlu0 %v986, 256
        %v989 = vpop.permute.xlu0 %988
        %v990 = vmul.f32 %v437, %v548
        %v991 = vmul.f32 %v438, %v555
        %v992 = vmul.f32 %v439, %v562
        %v993 = vmul.f32 %v440, %v569
        %v994 = vmul.f32 %v441, %v576
        %v995 = vmul.f32 %v442, %v583
        %v996 = vmul.f32 %v443, %v590
        %v997 = vmul.f32 %v444, %v597
        %v998 = vmul.f32 %v445, %v604
        %v999 = vmul.f32 %v446, %v611
        %v1000 = vmul.f32 %v447, %v618
        %v1001 = vmul.f32 %v448, %v625
        %v1002 = vmul.f32 %v449, %v632
        %v1003 = vmul.f32 %v450, %v639
        %v1004 = vmul.f32 %v451, %v646
        %v1005 = vmul.f32 %v452, %v653
        %v1006 = vmul.f32 %v453, %v660
        %v1007 = vmul.f32 %v454, %v667
        %v1008 = vmul.f32 %v455, %v674
        %v1009 = vmul.f32 %v456, %v681
        %v1010 = vmul.f32 %v457, %v688
        %v1011 = vmul.f32 %v458, %v695
        %v1012 = vmul.f32 %v459, %v702
        %v1013 = vmul.f32 %v460, %v709
        %v1014 = vmul.f32 %v461, %v716
        %v1015 = vmul.f32 %v462, %v723
        %v1016 = vmul.f32 %v463, %v730
        %v1017 = vmul.f32 %v464, %v737
        %v1018 = vmul.f32 %v465, %v744
        %v1019 = vmul.f32 %v466, %v751
        %v1020 = vmul.f32 %v467, %v758
        %v1021 = vmul.f32 %v468, %v765
        %v1022 = vmul.f32 %v469, %v772
        %v1023 = vmul.f32 %v470, %v779
        %v1024 = vmul.f32 %v471, %v786
        %v1025 = vmul.f32 %v472, %v793
        %v1026 = vmul.f32 %v473, %v800
        %v1027 = vmul.f32 %v474, %v807
        %v1028 = vmul.f32 %v475, %v814
        %v1029 = vmul.f32 %v476, %v821
        %v1030 = vmul.f32 %v477, %v828
        %v1031 = vmul.f32 %v478, %v835
        %v1032 = vmul.f32 %v479, %v842
        %v1033 = vmul.f32 %v480, %v849
        %v1034 = vmul.f32 %v481, %v856
        %v1035 = vmul.f32 %v482, %v863
        %v1036 = vmul.f32 %v483, %v870
        %v1037 = vmul.f32 %v484, %v877
        %v1038 = vmul.f32 %v485, %v884
        %v1039 = vmul.f32 %v486, %v891
        %v1040 = vmul.f32 %v487, %v898
        %v1041 = vmul.f32 %v488, %v905
        %v1042 = vmul.f32 %v489, %v912
        %v1043 = vmul.f32 %v490, %v919
        %v1044 = vmul.f32 %v491, %v926
        %v1045 = vmul.f32 %v492, %v933
        %v1046 = vmul.f32 %v493, %v940
        %v1047 = vmul.f32 %v494, %v947
        %v1048 = vmul.f32 %v495, %v954
        %v1049 = vmul.f32 %v496, %v961
        %v1050 = vmul.f32 %v497, %v968
        %v1051 = vmul.f32 %v498, %v975
        %v1052 = vmul.f32 %v499, %v982
        %v1053 = vmul.f32 %v500, %v989
        %v1054 = vrot.slane %v990, 4
        %v1055 = vadd.f32 %v990, %v1054
        %v1056 = vrot.slane %v1055, 2
        %v1057 = vadd.f32 %v1055, %v1056
        %v1058 = vrot.slane %v1057, 1
        %v1059 = vadd.f32 %v1057, %v1058
        %v1060 = vrot.slane %v991, 4
        %v1061 = vadd.f32 %v991, %v1060
        %v1062 = vrot.slane %v1061, 2
        %v1063 = vadd.f32 %v1061, %v1062
        %v1064 = vrot.slane %v1063, 1
        %v1065 = vadd.f32 %v1063, %v1064
        %v1066 = vrot.slane %v992, 4
        %v1067 = vadd.f32 %v992, %v1066
        %v1068 = vrot.slane %v1067, 2
        %v1069 = vadd.f32 %v1067, %v1068
        %v1070 = vrot.slane %v1069, 1
        %v1071 = vadd.f32 %v1069, %v1070
        %v1072 = vrot.slane %v993, 4
        %v1073 = vadd.f32 %v993, %v1072
        %v1074 = vrot.slane %v1073, 2
        %v1075 = vadd.f32 %v1073, %v1074
        %v1076 = vrot.slane %v1075, 1
        %v1077 = vadd.f32 %v1075, %v1076
        %v1078 = vrot.slane %v994, 4
        %v1079 = vadd.f32 %v994, %v1078
        %v1080 = vrot.slane %v1079, 2
        %v1081 = vadd.f32 %v1079, %v1080
        %v1082 = vrot.slane %v1081, 1
        %v1083 = vadd.f32 %v1081, %v1082
        %v1084 = vrot.slane %v995, 4
        %v1085 = vadd.f32 %v995, %v1084
        %v1086 = vrot.slane %v1085, 2
        %v1087 = vadd.f32 %v1085, %v1086
        %v1088 = vrot.slane %v1087, 1
        %v1089 = vadd.f32 %v1087, %v1088
        %v1090 = vrot.slane %v996, 4
        %v1091 = vadd.f32 %v996, %v1090
        %v1092 = vrot.slane %v1091, 2
        %v1093 = vadd.f32 %v1091, %v1092
        %v1094 = vrot.slane %v1093, 1
        %v1095 = vadd.f32 %v1093, %v1094
        %v1096 = vrot.slane %v997, 4
        %v1097 = vadd.f32 %v997, %v1096
        %v1098 = vrot.slane %v1097, 2
        %v1099 = vadd.f32 %v1097, %v1098
        %v1100 = vrot.slane %v1099, 1
        %v1101 = vadd.f32 %v1099, %v1100
        %v1102 = vrot.slane %v998, 4
        %v1103 = vadd.f32 %v998, %v1102
        %v1104 = vrot.slane %v1103, 2
        %v1105 = vadd.f32 %v1103, %v1104
        %v1106 = vrot.slane %v1105, 1
        %v1107 = vadd.f32 %v1105, %v1106
        %v1108 = vrot.slane %v999, 4
        %v1109 = vadd.f32 %v999, %v1108
        %v1110 = vrot.slane %v1109, 2
        %v1111 = vadd.f32 %v1109, %v1110
        %v1112 = vrot.slane %v1111, 1
        %v1113 = vadd.f32 %v1111, %v1112
        %v1114 = vrot.slane %v1000, 4
        %v1115 = vadd.f32 %v1000, %v1114
        %v1116 = vrot.slane %v1115, 2
        %v1117 = vadd.f32 %v1115, %v1116
        %v1118 = vrot.slane %v1117, 1
        %v1119 = vadd.f32 %v1117, %v1118
        %v1120 = vrot.slane %v1001, 4
        %v1121 = vadd.f32 %v1001, %v1120
        %v1122 = vrot.slane %v1121, 2
        %v1123 = vadd.f32 %v1121, %v1122
        %v1124 = vrot.slane %v1123, 1
        %v1125 = vadd.f32 %v1123, %v1124
        %v1126 = vrot.slane %v1002, 4
        %v1127 = vadd.f32 %v1002, %v1126
        %v1128 = vrot.slane %v1127, 2
        %v1129 = vadd.f32 %v1127, %v1128
        %v1130 = vrot.slane %v1129, 1
        %v1131 = vadd.f32 %v1129, %v1130
        %v1132 = vrot.slane %v1003, 4
        %v1133 = vadd.f32 %v1003, %v1132
        %v1134 = vrot.slane %v1133, 2
        %v1135 = vadd.f32 %v1133, %v1134
        %v1136 = vrot.slane %v1135, 1
        %v1137 = vadd.f32 %v1135, %v1136
        %v1138 = vrot.slane %v1004, 4
        %v1139 = vadd.f32 %v1004, %v1138
        %v1140 = vrot.slane %v1139, 2
        %v1141 = vadd.f32 %v1139, %v1140
        %v1142 = vrot.slane %v1141, 1
        %v1143 = vadd.f32 %v1141, %v1142
        %v1144 = vrot.slane %v1005, 4
        %v1145 = vadd.f32 %v1005, %v1144
        %v1146 = vrot.slane %v1145, 2
        %v1147 = vadd.f32 %v1145, %v1146
        %v1148 = vrot.slane %v1147, 1
        %v1149 = vadd.f32 %v1147, %v1148
        %v1150 = vrot.slane %v1006, 4
        %v1151 = vadd.f32 %v1006, %v1150
        %v1152 = vrot.slane %v1151, 2
        %v1153 = vadd.f32 %v1151, %v1152
        %v1154 = vrot.slane %v1153, 1
        %v1155 = vadd.f32 %v1153, %v1154
        %v1156 = vrot.slane %v1007, 4
        %v1157 = vadd.f32 %v1007, %v1156
        %v1158 = vrot.slane %v1157, 2
        %v1159 = vadd.f32 %v1157, %v1158
        %v1160 = vrot.slane %v1159, 1
        %v1161 = vadd.f32 %v1159, %v1160
        %v1162 = vrot.slane %v1008, 4
        %v1163 = vadd.f32 %v1008, %v1162
        %v1164 = vrot.slane %v1163, 2
        %v1165 = vadd.f32 %v1163, %v1164
        %v1166 = vrot.slane %v1165, 1
        %v1167 = vadd.f32 %v1165, %v1166
        %v1168 = vrot.slane %v1009, 4
        %v1169 = vadd.f32 %v1009, %v1168
        %v1170 = vrot.slane %v1169, 2
        %v1171 = vadd.f32 %v1169, %v1170
        %v1172 = vrot.slane %v1171, 1
        %v1173 = vadd.f32 %v1171, %v1172
        %v1174 = vrot.slane %v1010, 4
        %v1175 = vadd.f32 %v1010, %v1174
        %v1176 = vrot.slane %v1175, 2
        %v1177 = vadd.f32 %v1175, %v1176
        %v1178 = vrot.slane %v1177, 1
        %v1179 = vadd.f32 %v1177, %v1178
        %v1180 = vrot.slane %v1011, 4
        %v1181 = vadd.f32 %v1011, %v1180
        %v1182 = vrot.slane %v1181, 2
        %v1183 = vadd.f32 %v1181, %v1182
        %v1184 = vrot.slane %v1183, 1
        %v1185 = vadd.f32 %v1183, %v1184
        %v1186 = vrot.slane %v1012, 4
        %v1187 = vadd.f32 %v1012, %v1186
        %v1188 = vrot.slane %v1187, 2
        %v1189 = vadd.f32 %v1187, %v1188
        %v1190 = vrot.slane %v1189, 1
        %v1191 = vadd.f32 %v1189, %v1190
        %v1192 = vrot.slane %v1013, 4
        %v1193 = vadd.f32 %v1013, %v1192
        %v1194 = vrot.slane %v1193, 2
        %v1195 = vadd.f32 %v1193, %v1194
        %v1196 = vrot.slane %v1195, 1
        %v1197 = vadd.f32 %v1195, %v1196
        %v1198 = vrot.slane %v1014, 4
        %v1199 = vadd.f32 %v1014, %v1198
        %v1200 = vrot.slane %v1199, 2
        %v1201 = vadd.f32 %v1199, %v1200
        %v1202 = vrot.slane %v1201, 1
        %v1203 = vadd.f32 %v1201, %v1202
        %v1204 = vrot.slane %v1015, 4
        %v1205 = vadd.f32 %v1015, %v1204
        %v1206 = vrot.slane %v1205, 2
        %v1207 = vadd.f32 %v1205, %v1206
        %v1208 = vrot.slane %v1207, 1
        %v1209 = vadd.f32 %v1207, %v1208
        %v1210 = vrot.slane %v1016, 4
        %v1211 = vadd.f32 %v1016, %v1210
        %v1212 = vrot.slane %v1211, 2
        %v1213 = vadd.f32 %v1211, %v1212
        %v1214 = vrot.slane %v1213, 1
        %v1215 = vadd.f32 %v1213, %v1214
        %v1216 = vrot.slane %v1017, 4
        %v1217 = vadd.f32 %v1017, %v1216
        %v1218 = vrot.slane %v1217, 2
        %v1219 = vadd.f32 %v1217, %v1218
        %v1220 = vrot.slane %v1219, 1
        %v1221 = vadd.f32 %v1219, %v1220
        %v1222 = vrot.slane %v1018, 4
        %v1223 = vadd.f32 %v1018, %v1222
        %v1224 = vrot.slane %v1223, 2
        %v1225 = vadd.f32 %v1223, %v1224
        %v1226 = vrot.slane %v1225, 1
        %v1227 = vadd.f32 %v1225, %v1226
        %v1228 = vrot.slane %v1019, 4
        %v1229 = vadd.f32 %v1019, %v1228
        %v1230 = vrot.slane %v1229, 2
        %v1231 = vadd.f32 %v1229, %v1230
        %v1232 = vrot.slane %v1231, 1
        %v1233 = vadd.f32 %v1231, %v1232
        %v1234 = vrot.slane %v1020, 4
        %v1235 = vadd.f32 %v1020, %v1234
        %v1236 = vrot.slane %v1235, 2
        %v1237 = vadd.f32 %v1235, %v1236
        %v1238 = vrot.slane %v1237, 1
        %v1239 = vadd.f32 %v1237, %v1238
        %v1240 = vrot.slane %v1021, 4
        %v1241 = vadd.f32 %v1021, %v1240
        %v1242 = vrot.slane %v1241, 2
        %v1243 = vadd.f32 %v1241, %v1242
        %v1244 = vrot.slane %v1243, 1
        %v1245 = vadd.f32 %v1243, %v1244
        %v1246 = vrot.slane %v1022, 4
        %v1247 = vadd.f32 %v1022, %v1246
        %v1248 = vrot.slane %v1247, 2
        %v1249 = vadd.f32 %v1247, %v1248
        %v1250 = vrot.slane %v1249, 1
        %v1251 = vadd.f32 %v1249, %v1250
        %v1252 = vrot.slane %v1023, 4
        %v1253 = vadd.f32 %v1023, %v1252
        %v1254 = vrot.slane %v1253, 2
        %v1255 = vadd.f32 %v1253, %v1254
        %v1256 = vrot.slane %v1255, 1
        %v1257 = vadd.f32 %v1255, %v1256
        %v1258 = vrot.slane %v1024, 4
        %v1259 = vadd.f32 %v1024, %v1258
        %v1260 = vrot.slane %v1259, 2
        %v1261 = vadd.f32 %v1259, %v1260
        %v1262 = vrot.slane %v1261, 1
        %v1263 = vadd.f32 %v1261, %v1262
        %v1264 = vrot.slane %v1025, 4
        %v1265 = vadd.f32 %v1025, %v1264
        %v1266 = vrot.slane %v1265, 2
        %v1267 = vadd.f32 %v1265, %v1266
        %v1268 = vrot.slane %v1267, 1
        %v1269 = vadd.f32 %v1267, %v1268
        %v1270 = vrot.slane %v1026, 4
        %v1271 = vadd.f32 %v1026, %v1270
        %v1272 = vrot.slane %v1271, 2
        %v1273 = vadd.f32 %v1271, %v1272
        %v1274 = vrot.slane %v1273, 1
        %v1275 = vadd.f32 %v1273, %v1274
        %v1276 = vrot.slane %v1027, 4
        %v1277 = vadd.f32 %v1027, %v1276
        %v1278 = vrot.slane %v1277, 2
        %v1279 = vadd.f32 %v1277, %v1278
        %v1280 = vrot.slane %v1279, 1
        %v1281 = vadd.f32 %v1279, %v1280
        %v1282 = vrot.slane %v1028, 4
        %v1283 = vadd.f32 %v1028, %v1282
        %v1284 = vrot.slane %v1283, 2
        %v1285 = vadd.f32 %v1283, %v1284
        %v1286 = vrot.slane %v1285, 1
        %v1287 = vadd.f32 %v1285, %v1286
        %v1288 = vrot.slane %v1029, 4
        %v1289 = vadd.f32 %v1029, %v1288
        %v1290 = vrot.slane %v1289, 2
        %v1291 = vadd.f32 %v1289, %v1290
        %v1292 = vrot.slane %v1291, 1
        %v1293 = vadd.f32 %v1291, %v1292
        %v1294 = vrot.slane %v1030, 4
        %v1295 = vadd.f32 %v1030, %v1294
        %v1296 = vrot.slane %v1295, 2
        %v1297 = vadd.f32 %v1295, %v1296
        %v1298 = vrot.slane %v1297, 1
        %v1299 = vadd.f32 %v1297, %v1298
        %v1300 = vrot.slane %v1031, 4
        %v1301 = vadd.f32 %v1031, %v1300
        %v1302 = vrot.slane %v1301, 2
        %v1303 = vadd.f32 %v1301, %v1302
        %v1304 = vrot.slane %v1303, 1
        %v1305 = vadd.f32 %v1303, %v1304
        %v1306 = vrot.slane %v1032, 4
        %v1307 = vadd.f32 %v1032, %v1306
        %v1308 = vrot.slane %v1307, 2
        %v1309 = vadd.f32 %v1307, %v1308
        %v1310 = vrot.slane %v1309, 1
        %v1311 = vadd.f32 %v1309, %v1310
        %v1312 = vrot.slane %v1033, 4
        %v1313 = vadd.f32 %v1033, %v1312
        %v1314 = vrot.slane %v1313, 2
        %v1315 = vadd.f32 %v1313, %v1314
        %v1316 = vrot.slane %v1315, 1
        %v1317 = vadd.f32 %v1315, %v1316
        %v1318 = vrot.slane %v1034, 4
        %v1319 = vadd.f32 %v1034, %v1318
        %v1320 = vrot.slane %v1319, 2
        %v1321 = vadd.f32 %v1319, %v1320
        %v1322 = vrot.slane %v1321, 1
        %v1323 = vadd.f32 %v1321, %v1322
        %v1324 = vrot.slane %v1035, 4
        %v1325 = vadd.f32 %v1035, %v1324
        %v1326 = vrot.slane %v1325, 2
        %v1327 = vadd.f32 %v1325, %v1326
        %v1328 = vrot.slane %v1327, 1
        %v1329 = vadd.f32 %v1327, %v1328
        %v1330 = vrot.slane %v1036, 4
        %v1331 = vadd.f32 %v1036, %v1330
        %v1332 = vrot.slane %v1331, 2
        %v1333 = vadd.f32 %v1331, %v1332
        %v1334 = vrot.slane %v1333, 1
        %v1335 = vadd.f32 %v1333, %v1334
        %v1336 = vrot.slane %v1037, 4
        %v1337 = vadd.f32 %v1037, %v1336
        %v1338 = vrot.slane %v1337, 2
        %v1339 = vadd.f32 %v1337, %v1338
        %v1340 = vrot.slane %v1339, 1
        %v1341 = vadd.f32 %v1339, %v1340
        %v1342 = vrot.slane %v1038, 4
        %v1343 = vadd.f32 %v1038, %v1342
        %v1344 = vrot.slane %v1343, 2
        %v1345 = vadd.f32 %v1343, %v1344
        %v1346 = vrot.slane %v1345, 1
        %v1347 = vadd.f32 %v1345, %v1346
        %v1348 = vrot.slane %v1039, 4
        %v1349 = vadd.f32 %v1039, %v1348
        %v1350 = vrot.slane %v1349, 2
        %v1351 = vadd.f32 %v1349, %v1350
        %v1352 = vrot.slane %v1351, 1
        %v1353 = vadd.f32 %v1351, %v1352
        %v1354 = vrot.slane %v1040, 4
        %v1355 = vadd.f32 %v1040, %v1354
        %v1356 = vrot.slane %v1355, 2
        %v1357 = vadd.f32 %v1355, %v1356
        %v1358 = vrot.slane %v1357, 1
        %v1359 = vadd.f32 %v1357, %v1358
        %v1360 = vrot.slane %v1041, 4
        %v1361 = vadd.f32 %v1041, %v1360
        %v1362 = vrot.slane %v1361, 2
        %v1363 = vadd.f32 %v1361, %v1362
        %v1364 = vrot.slane %v1363, 1
        %v1365 = vadd.f32 %v1363, %v1364
        %v1366 = vrot.slane %v1042, 4
        %v1367 = vadd.f32 %v1042, %v1366
        %v1368 = vrot.slane %v1367, 2
        %v1369 = vadd.f32 %v1367, %v1368
        %v1370 = vrot.slane %v1369, 1
        %v1371 = vadd.f32 %v1369, %v1370
        %v1372 = vrot.slane %v1043, 4
        %v1373 = vadd.f32 %v1043, %v1372
        %v1374 = vrot.slane %v1373, 2
        %v1375 = vadd.f32 %v1373, %v1374
        %v1376 = vrot.slane %v1375, 1
        %v1377 = vadd.f32 %v1375, %v1376
        %v1378 = vrot.slane %v1044, 4
        %v1379 = vadd.f32 %v1044, %v1378
        %v1380 = vrot.slane %v1379, 2
        %v1381 = vadd.f32 %v1379, %v1380
        %v1382 = vrot.slane %v1381, 1
        %v1383 = vadd.f32 %v1381, %v1382
        %v1384 = vrot.slane %v1045, 4
        %v1385 = vadd.f32 %v1045, %v1384
        %v1386 = vrot.slane %v1385, 2
        %v1387 = vadd.f32 %v1385, %v1386
        %v1388 = vrot.slane %v1387, 1
        %v1389 = vadd.f32 %v1387, %v1388
        %v1390 = vrot.slane %v1046, 4
        %v1391 = vadd.f32 %v1046, %v1390
        %v1392 = vrot.slane %v1391, 2
        %v1393 = vadd.f32 %v1391, %v1392
        %v1394 = vrot.slane %v1393, 1
        %v1395 = vadd.f32 %v1393, %v1394
        %v1396 = vrot.slane %v1047, 4
        %v1397 = vadd.f32 %v1047, %v1396
        %v1398 = vrot.slane %v1397, 2
        %v1399 = vadd.f32 %v1397, %v1398
        %v1400 = vrot.slane %v1399, 1
        %v1401 = vadd.f32 %v1399, %v1400
        %v1402 = vrot.slane %v1048, 4
        %v1403 = vadd.f32 %v1048, %v1402
        %v1404 = vrot.slane %v1403, 2
        %v1405 = vadd.f32 %v1403, %v1404
        %v1406 = vrot.slane %v1405, 1
        %v1407 = vadd.f32 %v1405, %v1406
        %v1408 = vrot.slane %v1049, 4
        %v1409 = vadd.f32 %v1049, %v1408
        %v1410 = vrot.slane %v1409, 2
        %v1411 = vadd.f32 %v1409, %v1410
        %v1412 = vrot.slane %v1411, 1
        %v1413 = vadd.f32 %v1411, %v1412
        %v1414 = vrot.slane %v1050, 4
        %v1415 = vadd.f32 %v1050, %v1414
        %v1416 = vrot.slane %v1415, 2
        %v1417 = vadd.f32 %v1415, %v1416
        %v1418 = vrot.slane %v1417, 1
        %v1419 = vadd.f32 %v1417, %v1418
        %v1420 = vrot.slane %v1051, 4
        %v1421 = vadd.f32 %v1051, %v1420
        %v1422 = vrot.slane %v1421, 2
        %v1423 = vadd.f32 %v1421, %v1422
        %v1424 = vrot.slane %v1423, 1
        %v1425 = vadd.f32 %v1423, %v1424
        %v1426 = vrot.slane %v1052, 4
        %v1427 = vadd.f32 %v1052, %v1426
        %v1428 = vrot.slane %v1427, 2
        %v1429 = vadd.f32 %v1427, %v1428
        %v1430 = vrot.slane %v1429, 1
        %v1431 = vadd.f32 %v1429, %v1430
        %v1432 = vrot.slane %v1053, 4
        %v1433 = vadd.f32 %v1053, %v1432
        %v1434 = vrot.slane %v1433, 2
        %v1435 = vadd.f32 %v1433, %v1434
        %v1436 = vrot.slane %v1435, 1
        %v1437 = vadd.f32 %v1435, %v1436
        %v1446 = vrot.slane %v534, 1
        %v1447 = vrot.slane %v534, 2
        %v1448 = vrot.slane %v534, 3
        %v1449 = vrot.slane %v534, 4
        %v1450 = vrot.slane %v534, 5
        %v1451 = vrot.slane %v534, 6
        %v1452 = vrot.slane %v534, 7
        %v1453 = vrot.slane %v535, 1
        %v1454 = vrot.slane %v535, 2
        %v1455 = vrot.slane %v535, 3
        %v1456 = vrot.slane %v535, 4
        %v1457 = vrot.slane %v535, 5
        %v1458 = vrot.slane %v535, 6
        %v1459 = vrot.slane %v535, 7
        %v1460 = vrot.slane %v536, 1
        %v1461 = vrot.slane %v536, 2
        %v1462 = vrot.slane %v536, 3
        %v1463 = vrot.slane %v536, 4
        %v1464 = vrot.slane %v536, 5
        %v1465 = vrot.slane %v536, 6
        %v1466 = vrot.slane %v536, 7
        %v1467 = vrot.slane %v537, 1
        %v1468 = vrot.slane %v537, 2
        %v1469 = vrot.slane %v537, 3
        %v1470 = vrot.slane %v537, 4
        %v1471 = vrot.slane %v537, 5
        %v1472 = vrot.slane %v537, 6
        %v1473 = vrot.slane %v537, 7
        %v1474 = vrot.slane %v538, 1
        %v1475 = vrot.slane %v538, 2
        %v1476 = vrot.slane %v538, 3
        %v1477 = vrot.slane %v538, 4
        %v1478 = vrot.slane %v538, 5
        %v1479 = vrot.slane %v538, 6
        %v1480 = vrot.slane %v538, 7
        %v1481 = vrot.slane %v539, 1
        %v1482 = vrot.slane %v539, 2
        %v1483 = vrot.slane %v539, 3
        %v1484 = vrot.slane %v539, 4
        %v1485 = vrot.slane %v539, 5
        %v1486 = vrot.slane %v539, 6
        %v1487 = vrot.slane %v539, 7
        %v1488 = vrot.slane %v540, 1
        %v1489 = vrot.slane %v540, 2
        %v1490 = vrot.slane %v540, 3
        %v1491 = vrot.slane %v540, 4
        %v1492 = vrot.slane %v540, 5
        %v1493 = vrot.slane %v540, 6
        %v1494 = vrot.slane %v540, 7
        %v1495 = vrot.slane %v541, 1
        %v1496 = vrot.slane %v541, 2
        %v1497 = vrot.slane %v541, 3
        %v1498 = vrot.slane %v541, 4
        %v1499 = vrot.slane %v541, 5
        %v1500 = vrot.slane %v541, 6
        %v1501 = vrot.slane %v541, 7
        %v1566 = vrcp.pop %v534
        %v1567 = vmul.f32 %v1059, %v1566
        %v1568 = vrcp.pop %v1446
        %v1569 = vmul.f32 %v1065, %v1568
        %v1570 = vrcp.pop %v1447
        %v1571 = vmul.f32 %v1071, %v1570
        %v1572 = vrcp.pop %v1448
        %v1573 = vmul.f32 %v1077, %v1572
        %v1574 = vrcp.pop %v1449
        %v1575 = vmul.f32 %v1083, %v1574
        %v1576 = vrcp.pop %v1450
        %v1577 = vmul.f32 %v1089, %v1576
        %v1578 = vrcp.pop %v1451
        %v1579 = vmul.f32 %v1095, %v1578
        %v1580 = vrcp.pop %v1452
        %v1581 = vmul.f32 %v1101, %v1580
        %v1582 = vrcp.pop %v535
        %v1583 = vmul.f32 %v1107, %v1582
        %v1584 = vrcp.pop %v1453
        %v1585 = vmul.f32 %v1113, %v1584
        %v1586 = vrcp.pop %v1454
        %v1587 = vmul.f32 %v1119, %v1586
        %v1588 = vrcp.pop %v1455
        %v1589 = vmul.f32 %v1125, %v1588
        %v1590 = vrcp.pop %v1456
        %v1591 = vmul.f32 %v1131, %v1590
        %v1592 = vrcp.pop %v1457
        %v1593 = vmul.f32 %v1137, %v1592
        %v1594 = vrcp.pop %v1458
        %v1595 = vmul.f32 %v1143, %v1594
        %v1596 = vrcp.pop %v1459
        %v1597 = vmul.f32 %v1149, %v1596
        %v1598 = vrcp.pop %v536
        %v1599 = vmul.f32 %v1155, %v1598
        %v1600 = vrcp.pop %v1460
        %v1601 = vmul.f32 %v1161, %v1600
        %v1602 = vrcp.pop %v1461
        %v1603 = vmul.f32 %v1167, %v1602
        %v1604 = vrcp.pop %v1462
        %v1605 = vmul.f32 %v1173, %v1604
        %v1606 = vrcp.pop %v1463
        %v1607 = vmul.f32 %v1179, %v1606
        %v1608 = vrcp.pop %v1464
        %v1609 = vmul.f32 %v1185, %v1608
        %v1610 = vrcp.pop %v1465
        %v1611 = vmul.f32 %v1191, %v1610
        %v1612 = vrcp.pop %v1466
        %v1613 = vmul.f32 %v1197, %v1612
        %v1614 = vrcp.pop %v537
        %v1615 = vmul.f32 %v1203, %v1614
        %v1616 = vrcp.pop %v1467
        %v1617 = vmul.f32 %v1209, %v1616
        %v1618 = vrcp.pop %v1468
        %v1619 = vmul.f32 %v1215, %v1618
        %v1620 = vrcp.pop %v1469
        %v1621 = vmul.f32 %v1221, %v1620
        %v1622 = vrcp.pop %v1470
        %v1623 = vmul.f32 %v1227, %v1622
        %v1624 = vrcp.pop %v1471
        %v1625 = vmul.f32 %v1233, %v1624
        %v1626 = vrcp.pop %v1472
        %v1627 = vmul.f32 %v1239, %v1626
        %v1628 = vrcp.pop %v1473
        %v1629 = vmul.f32 %v1245, %v1628
        %v1630 = vrcp.pop %v538
        %v1631 = vmul.f32 %v1251, %v1630
        %v1632 = vrcp.pop %v1474
        %v1633 = vmul.f32 %v1257, %v1632
        %v1634 = vrcp.pop %v1475
        %v1635 = vmul.f32 %v1263, %v1634
        %v1636 = vrcp.pop %v1476
        %v1637 = vmul.f32 %v1269, %v1636
        %v1638 = vrcp.pop %v1477
        %v1639 = vmul.f32 %v1275, %v1638
        %v1640 = vrcp.pop %v1478
        %v1641 = vmul.f32 %v1281, %v1640
        %v1642 = vrcp.pop %v1479
        %v1643 = vmul.f32 %v1287, %v1642
        %v1644 = vrcp.pop %v1480
        %v1645 = vmul.f32 %v1293, %v1644
        %v1646 = vrcp.pop %v539
        %v1647 = vmul.f32 %v1299, %v1646
        %v1648 = vrcp.pop %v1481
        %v1649 = vmul.f32 %v1305, %v1648
        %v1650 = vrcp.pop %v1482
        %v1651 = vmul.f32 %v1311, %v1650
        %v1652 = vrcp.pop %v1483
        %v1653 = vmul.f32 %v1317, %v1652
        %v1654 = vrcp.pop %v1484
        %v1655 = vmul.f32 %v1323, %v1654
        %v1656 = vrcp.pop %v1485
        %v1657 = vmul.f32 %v1329, %v1656
        %v1658 = vrcp.pop %v1486
        %v1659 = vmul.f32 %v1335, %v1658
        %v1660 = vrcp.pop %v1487
        %v1661 = vmul.f32 %v1341, %v1660
        %v1662 = vrcp.pop %v540
        %v1663 = vmul.f32 %v1347, %v1662
        %v1664 = vrcp.pop %v1488
        %v1665 = vmul.f32 %v1353, %v1664
        %v1666 = vrcp.pop %v1489
        %v1667 = vmul.f32 %v1359, %v1666
        %v1668 = vrcp.pop %v1490
        %v1669 = vmul.f32 %v1365, %v1668
        %v1670 = vrcp.pop %v1491
        %v1671 = vmul.f32 %v1371, %v1670
        %v1672 = vrcp.pop %v1492
        %v1673 = vmul.f32 %v1377, %v1672
        %v1674 = vrcp.pop %v1493
        %v1675 = vmul.f32 %v1383, %v1674
        %v1676 = vrcp.pop %v1494
        %v1677 = vmul.f32 %v1389, %v1676
        %v1678 = vrcp.pop %v541
        %v1679 = vmul.f32 %v1395, %v1678
        %v1680 = vrcp.pop %v1495
        %v1681 = vmul.f32 %v1401, %v1680
        %v1682 = vrcp.pop %v1496
        %v1683 = vmul.f32 %v1407, %v1682
        %v1684 = vrcp.pop %v1497
        %v1685 = vmul.f32 %v1413, %v1684
        %v1686 = vrcp.pop %v1498
        %v1687 = vmul.f32 %v1419, %v1686
        %v1688 = vrcp.pop %v1499
        %v1689 = vmul.f32 %v1425, %v1688
        %v1690 = vrcp.pop %v1500
        %v1691 = vmul.f32 %v1431, %v1690
        %v1692 = vrcp.pop %v1501
        %v1693 = vmul.f32 %v1437, %v1692
        %v1694 = vpack.c.bf16 %v1567, %v1567
        %v1695 = vpack.c.bf16 %v1569, %v1569
        %v1696 = vpack.c.bf16 %v1571, %v1571
        %v1697 = vpack.c.bf16 %v1573, %v1573
        %v1698 = vpack.c.bf16 %v1575, %v1575
        %v1699 = vpack.c.bf16 %v1577, %v1577
        %v1700 = vpack.c.bf16 %v1579, %v1579
        %v1701 = vpack.c.bf16 %v1581, %v1581
        %v1702 = vpack.c.bf16 %v1583, %v1583
        %v1703 = vpack.c.bf16 %v1585, %v1585
        %v1704 = vpack.c.bf16 %v1587, %v1587
        %v1705 = vpack.c.bf16 %v1589, %v1589
        %v1706 = vpack.c.bf16 %v1591, %v1591
        %v1707 = vpack.c.bf16 %v1593, %v1593
        %v1708 = vpack.c.bf16 %v1595, %v1595
        %v1709 = vpack.c.bf16 %v1597, %v1597
        %v1710 = vpack.c.bf16 %v1599, %v1599
        %v1711 = vpack.c.bf16 %v1601, %v1601
        %v1712 = vpack.c.bf16 %v1603, %v1603
        %v1713 = vpack.c.bf16 %v1605, %v1605
        %v1714 = vpack.c.bf16 %v1607, %v1607
        %v1715 = vpack.c.bf16 %v1609, %v1609
        %v1716 = vpack.c.bf16 %v1611, %v1611
        %v1717 = vpack.c.bf16 %v1613, %v1613
        %v1718 = vpack.c.bf16 %v1615, %v1615
        %v1719 = vpack.c.bf16 %v1617, %v1617
        %v1720 = vpack.c.bf16 %v1619, %v1619
        %v1721 = vpack.c.bf16 %v1621, %v1621
        %v1722 = vpack.c.bf16 %v1623, %v1623
        %v1723 = vpack.c.bf16 %v1625, %v1625
        %v1724 = vpack.c.bf16 %v1627, %v1627
        %v1725 = vpack.c.bf16 %v1629, %v1629
        %v1726 = vpack.c.bf16 %v1631, %v1631
        %v1727 = vpack.c.bf16 %v1633, %v1633
        %v1728 = vpack.c.bf16 %v1635, %v1635
        %v1729 = vpack.c.bf16 %v1637, %v1637
        %v1730 = vpack.c.bf16 %v1639, %v1639
        %v1731 = vpack.c.bf16 %v1641, %v1641
        %v1732 = vpack.c.bf16 %v1643, %v1643
        %v1733 = vpack.c.bf16 %v1645, %v1645
        %v1734 = vpack.c.bf16 %v1647, %v1647
        %v1735 = vpack.c.bf16 %v1649, %v1649
        %v1736 = vpack.c.bf16 %v1651, %v1651
        %v1737 = vpack.c.bf16 %v1653, %v1653
        %v1738 = vpack.c.bf16 %v1655, %v1655
        %v1739 = vpack.c.bf16 %v1657, %v1657
        %v1740 = vpack.c.bf16 %v1659, %v1659
        %v1741 = vpack.c.bf16 %v1661, %v1661
        %v1742 = vpack.c.bf16 %v1663, %v1663
        %v1743 = vpack.c.bf16 %v1665, %v1665
        %v1744 = vpack.c.bf16 %v1667, %v1667
        %v1745 = vpack.c.bf16 %v1669, %v1669
        %v1746 = vpack.c.bf16 %v1671, %v1671
        %v1747 = vpack.c.bf16 %v1673, %v1673
        %v1748 = vpack.c.bf16 %v1675, %v1675
        %v1749 = vpack.c.bf16 %v1677, %v1677
        %v1750 = vpack.c.bf16 %v1679, %v1679
        %v1751 = vpack.c.bf16 %v1681, %v1681
        %v1752 = vpack.c.bf16 %v1683, %v1683
        %v1753 = vpack.c.bf16 %v1685, %v1685
        %v1754 = vpack.c.bf16 %v1687, %v1687
        %v1755 = vpack.c.bf16 %v1689, %v1689
        %v1756 = vpack.c.bf16 %v1691, %v1691
        %v1757 = vpack.c.bf16 %v1693, %v1693
        %v1758 = vld [vmem:[%s3] sm:$0xf]
        %v1759 = vld [vmem:[%s3 + $0x4] sm:$0xf]
        %v1760 = vld [vmem:[%s3 + $0x8] sm:$0xf]
        %v1761 = vld [vmem:[%s3 + $0xc] sm:$0xf]
        %v1762 = vld [vmem:[%s3 + $0x10] sm:$0xf]
        %v1763 = vld [vmem:[%s3 + $0x14] sm:$0xf]
        %v1764 = vld [vmem:[%s3 + $0x18] sm:$0xf]
        %v1765 = vld [vmem:[%s3 + $0x1c] sm:$0xf]
        %v1766 = vld [vmem:[%s3 + $0x20] sm:$0xf]
        %v1767 = vld [vmem:[%s3 + $0x24] sm:$0xf]
        %v1768 = vld [vmem:[%s3 + $0x28] sm:$0xf]
        %v1769 = vld [vmem:[%s3 + $0x2c] sm:$0xf]
        %v1770 = vld [vmem:[%s3 + $0x30] sm:$0xf]
        %v1771 = vld [vmem:[%s3 + $0x34] sm:$0xf]
        %v1772 = vld [vmem:[%s3 + $0x38] sm:$0xf]
        %v1773 = vld [vmem:[%s3 + $0x3c] sm:$0xf]
        %v1838 = vunpack.c.l.b16 %v1694
        %v1839 = vunpack.c.l.b16 %v1695
        %v1840 = vunpack.c.l.b16 %v1696
        %v1841 = vunpack.c.l.b16 %v1697
        %v1842 = vunpack.c.l.b16 %v1698
        %v1843 = vunpack.c.l.b16 %v1699
        %v1844 = vunpack.c.l.b16 %v1700
        %v1845 = vunpack.c.l.b16 %v1701
        %v1846 = vunpack.c.l.b16 %v1702
        %v1847 = vunpack.c.l.b16 %v1703
        %v1848 = vunpack.c.l.b16 %v1704
        %v1849 = vunpack.c.l.b16 %v1705
        %v1850 = vunpack.c.l.b16 %v1706
        %v1851 = vunpack.c.l.b16 %v1707
        %v1852 = vunpack.c.l.b16 %v1708
        %v1853 = vunpack.c.l.b16 %v1709
        %v1854 = vunpack.c.l.b16 %v1710
        %v1855 = vunpack.c.l.b16 %v1711
        %v1856 = vunpack.c.l.b16 %v1712
        %v1857 = vunpack.c.l.b16 %v1713
        %v1858 = vunpack.c.l.b16 %v1714
        %v1859 = vunpack.c.l.b16 %v1715
        %v1860 = vunpack.c.l.b16 %v1716
        %v1861 = vunpack.c.l.b16 %v1717
        %v1862 = vunpack.c.l.b16 %v1718
        %v1863 = vunpack.c.l.b16 %v1719
        %v1864 = vunpack.c.l.b16 %v1720
        %v1865 = vunpack.c.l.b16 %v1721
        %v1866 = vunpack.c.l.b16 %v1722
        %v1867 = vunpack.c.l.b16 %v1723
        %v1868 = vunpack.c.l.b16 %v1724
        %v1869 = vunpack.c.l.b16 %v1725
        %v1870 = vunpack.c.l.b16 %v1726
        %v1871 = vunpack.c.l.b16 %v1727
        %v1872 = vunpack.c.l.b16 %v1728
        %v1873 = vunpack.c.l.b16 %v1729
        %v1874 = vunpack.c.l.b16 %v1730
        %v1875 = vunpack.c.l.b16 %v1731
        %v1876 = vunpack.c.l.b16 %v1732
        %v1877 = vunpack.c.l.b16 %v1733
        %v1878 = vunpack.c.l.b16 %v1734
        %v1879 = vunpack.c.l.b16 %v1735
        %v1880 = vunpack.c.l.b16 %v1736
        %v1881 = vunpack.c.l.b16 %v1737
        %v1882 = vunpack.c.l.b16 %v1738
        %v1883 = vunpack.c.l.b16 %v1739
        %v1884 = vunpack.c.l.b16 %v1740
        %v1885 = vunpack.c.l.b16 %v1741
        %v1886 = vunpack.c.l.b16 %v1742
        %v1887 = vunpack.c.l.b16 %v1743
        %v1888 = vunpack.c.l.b16 %v1744
        %v1889 = vunpack.c.l.b16 %v1745
        %v1890 = vunpack.c.l.b16 %v1746
        %v1891 = vunpack.c.l.b16 %v1747
        %v1892 = vunpack.c.l.b16 %v1748
        %v1893 = vunpack.c.l.b16 %v1749
        %v1894 = vunpack.c.l.b16 %v1750
        %v1895 = vunpack.c.l.b16 %v1751
        %v1896 = vunpack.c.l.b16 %v1752
        %v1897 = vunpack.c.l.b16 %v1753
        %v1898 = vunpack.c.l.b16 %v1754
        %v1899 = vunpack.c.l.b16 %v1755
        %v1900 = vunpack.c.l.b16 %v1756
        %v1901 = vunpack.c.l.b16 %v1757
        %v1902 = vrot.slane %v1839, 7
        %vm1903 = vcmask 1041409
        %v1904 = vsel %vm1903, %v1902, %v1838
        %v1905 = vrot.slane %v1840, 6
        %vm1906 = vcmask 1042434
        %v1907 = vsel %vm1906, %v1905, %v1904
        %v1908 = vrot.slane %v1841, 5
        %vm1909 = vcmask 1043459
        %v1910 = vsel %vm1909, %v1908, %v1907
        %v1911 = vrot.slane %v1842, 4
        %vm1912 = vcmask 1044484
        %v1913 = vsel %vm1912, %v1911, %v1910
        %v1914 = vrot.slane %v1843, 3
        %vm1915 = vcmask 1045509
        %v1916 = vsel %vm1915, %v1914, %v1913
        %v1917 = vrot.slane %v1844, 2
        %vm1918 = vcmask 1046534
        %v1919 = vsel %vm1918, %v1917, %v1916
        %v1920 = vrot.slane %v1845, 1
        %vm1921 = vcmask 1047559
        %v1922 = vsel %vm1921, %v1920, %v1919
        %v1923 = vrot.slane %v1847, 7
        %v1924 = vsel %vm1903, %v1923, %v1846
        %v1925 = vrot.slane %v1848, 6
        %v1926 = vsel %vm1906, %v1925, %v1924
        %v1927 = vrot.slane %v1849, 5
        %v1928 = vsel %vm1909, %v1927, %v1926
        %v1929 = vrot.slane %v1850, 4
        %v1930 = vsel %vm1912, %v1929, %v1928
        %v1931 = vrot.slane %v1851, 3
        %v1932 = vsel %vm1915, %v1931, %v1930
        %v1933 = vrot.slane %v1852, 2
        %v1934 = vsel %vm1918, %v1933, %v1932
        %v1935 = vrot.slane %v1853, 1
        %v1936 = vsel %vm1921, %v1935, %v1934
        %v1937 = vrot.slane %v1855, 7
        %v1938 = vsel %vm1903, %v1937, %v1854
        %v1939 = vrot.slane %v1856, 6
        %v1940 = vsel %vm1906, %v1939, %v1938
        %v1941 = vrot.slane %v1857, 5
        %v1942 = vsel %vm1909, %v1941, %v1940
        %v1943 = vrot.slane %v1858, 4
        %v1944 = vsel %vm1912, %v1943, %v1942
        %v1945 = vrot.slane %v1859, 3
        %v1946 = vsel %vm1915, %v1945, %v1944
        %v1947 = vrot.slane %v1860, 2
        %v1948 = vsel %vm1918, %v1947, %v1946
        %v1949 = vrot.slane %v1861, 1
        %v1950 = vsel %vm1921, %v1949, %v1948
        %v1951 = vrot.slane %v1863, 7
        %v1952 = vsel %vm1903, %v1951, %v1862
        %v1953 = vrot.slane %v1864, 6
        %v1954 = vsel %vm1906, %v1953, %v1952
        %v1955 = vrot.slane %v1865, 5
        %v1956 = vsel %vm1909, %v1955, %v1954
        %v1957 = vrot.slane %v1866, 4
        %v1958 = vsel %vm1912, %v1957, %v1956
        %v1959 = vrot.slane %v1867, 3
        %v1960 = vsel %vm1915, %v1959, %v1958
        %v1961 = vrot.slane %v1868, 2
        %v1962 = vsel %vm1918, %v1961, %v1960
        %v1963 = vrot.slane %v1869, 1
        %v1964 = vsel %vm1921, %v1963, %v1962
        %v1965 = vrot.slane %v1871, 7
        %v1966 = vsel %vm1903, %v1965, %v1870
        %v1967 = vrot.slane %v1872, 6
        %v1968 = vsel %vm1906, %v1967, %v1966
        %v1969 = vrot.slane %v1873, 5
        %v1970 = vsel %vm1909, %v1969, %v1968
        %v1971 = vrot.slane %v1874, 4
        %v1972 = vsel %vm1912, %v1971, %v1970
        %v1973 = vrot.slane %v1875, 3
        %v1974 = vsel %vm1915, %v1973, %v1972
        %v1975 = vrot.slane %v1876, 2
        %v1976 = vsel %vm1918, %v1975, %v1974
        %v1977 = vrot.slane %v1877, 1
        %v1978 = vsel %vm1921, %v1977, %v1976
        %v1979 = vrot.slane %v1879, 7
        %v1980 = vsel %vm1903, %v1979, %v1878
        %v1981 = vrot.slane %v1880, 6
        %v1982 = vsel %vm1906, %v1981, %v1980
        %v1983 = vrot.slane %v1881, 5
        %v1984 = vsel %vm1909, %v1983, %v1982
        %v1985 = vrot.slane %v1882, 4
        %v1986 = vsel %vm1912, %v1985, %v1984
        %v1987 = vrot.slane %v1883, 3
        %v1988 = vsel %vm1915, %v1987, %v1986
        %v1989 = vrot.slane %v1884, 2
        %v1990 = vsel %vm1918, %v1989, %v1988
        %v1991 = vrot.slane %v1885, 1
        %v1992 = vsel %vm1921, %v1991, %v1990
        %v1993 = vrot.slane %v1887, 7
        %v1994 = vsel %vm1903, %v1993, %v1886
        %v1995 = vrot.slane %v1888, 6
        %v1996 = vsel %vm1906, %v1995, %v1994
        %v1997 = vrot.slane %v1889, 5
        %v1998 = vsel %vm1909, %v1997, %v1996
        %v1999 = vrot.slane %v1890, 4
        %v2000 = vsel %vm1912, %v1999, %v1998
        %v2001 = vrot.slane %v1891, 3
        %v2002 = vsel %vm1915, %v2001, %v2000
        %v2003 = vrot.slane %v1892, 2
        %v2004 = vsel %vm1918, %v2003, %v2002
        %v2005 = vrot.slane %v1893, 1
        %v2006 = vsel %vm1921, %v2005, %v2004
        %v2007 = vrot.slane %v1895, 7
        %v2008 = vsel %vm1903, %v2007, %v1894
        %v2009 = vrot.slane %v1896, 6
        %v2010 = vsel %vm1906, %v2009, %v2008
        %v2011 = vrot.slane %v1897, 5
        %v2012 = vsel %vm1909, %v2011, %v2010
        %v2013 = vrot.slane %v1898, 4
        %v2014 = vsel %vm1912, %v2013, %v2012
        %v2015 = vrot.slane %v1899, 3
        %v2016 = vsel %vm1915, %v2015, %v2014
        %v2017 = vrot.slane %v1900, 2
        %v2018 = vsel %vm1918, %v2017, %v2016
        %v2019 = vrot.slane %v1901, 1
        %v2020 = vsel %vm1921, %v2019, %v2018
        %v2021 = vpack.c.b16 %v1936, %v1922
        %v2022 = vpack.c.b16 %v1964, %v1950
        %v2023 = vpack.c.b16 %v1992, %v1978
        %v2024 = vpack.c.b16 %v2020, %v2006
        %v2045 = vunpack.c.l.b16 %v1758
        %v2046 = vunpack.c.l.b16 %v1759
        %v2047 = vunpack.c.l.b16 %v1760
        %v2048 = vunpack.c.l.b16 %v1761
        %v2049 = vunpack.c.l.b16 %v1762
        %v2050 = vunpack.c.l.b16 %v1763
        %v2051 = vunpack.c.l.b16 %v1764
        %v2052 = vunpack.c.l.b16 %v1765
        %v2053 = vunpack.c.l.b16 %v1766
        %v2054 = vunpack.c.l.b16 %v1767
        %v2055 = vunpack.c.l.b16 %v1768
        %v2056 = vunpack.c.l.b16 %v1769
        %v2057 = vunpack.c.l.b16 %v1770
        %v2058 = vunpack.c.l.b16 %v1771
        %v2059 = vunpack.c.l.b16 %v1772
        %v2060 = vunpack.c.l.b16 %v1773
        %v2061 = vpack.c.b16 %v2046, %v2045
        %v2062 = vpack.c.b16 %v2048, %v2047
        %v2063 = vpack.c.b16 %v2050, %v2049
        %v2064 = vpack.c.b16 %v2052, %v2051
        %v2065 = vpack.c.b16 %v2054, %v2053
        %v2066 = vpack.c.b16 %v2056, %v2055
        %v2067 = vpack.c.b16 %v2058, %v2057
        %v2068 = vpack.c.b16 %v2060, %v2059
        %2077 = vmatprep.subr.bf16.mxu0 0
        %2078 = vmatpush1.bf16.msra.mxu0 %v2061
        %2079 = vmatprep.subr.bf16.mxu0 0
        %2080 = vmatpush1.bf16.msra.mxu0 %v2062
        %2081 = vmatprep.subr.bf16.mxu0 0
        %2082 = vmatpush1.bf16.msra.mxu0 %v2063
        %2083 = vmatprep.subr.bf16.mxu0 0
        %2084 = vmatpush1.bf16.msra.mxu0 %v2064
        %2085 = vmatprep.subr.bf16.mxu0 0
        %2086 = vmatpush1.bf16.msra.mxu0 %v2065
        %2087 = vmatprep.subr.bf16.mxu0 0
        %2088 = vmatpush1.bf16.msra.mxu0 %v2066
        %2089 = vmatprep.subr.bf16.mxu0 0
        %2090 = vmatpush1.bf16.msra.mxu0 %v2067
        %2091 = vmatprep.subr.bf16.mxu0 0
        %2092 = vmatpush1.bf16.msra.mxu0 %v2068
        %2093 = vmatprep.subr.bf16.mxu0 0
        %2094 = vmatpush1.bf16.msra.mxu0 0
        %2095 = vmatprep.subr.bf16.mxu0 0
        %2096 = vmatpush1.bf16.msra.mxu0 0
        %2097 = vmatprep.subr.bf16.mxu0 0
        %2098 = vmatpush1.bf16.msra.mxu0 0
        %2099 = vmatprep.subr.bf16.mxu0 0
        %2100 = vmatpush1.bf16.msra.mxu0 0
        %2101 = vmatprep.subr.bf16.mxu0 0
        %2102 = vmatpush1.bf16.msra.mxu0 0
        %2103 = vmatprep.subr.bf16.mxu0 0
        %2104 = vmatpush1.bf16.msra.mxu0 0
        %2105 = vmatprep.subr.bf16.mxu0 0
        %2106 = vmatpush1.bf16.msra.mxu0 0
        %2107 = vmatprep.subr.bf16.mxu0 0
        %2108 = vmatpush1.bf16.msra.mxu0 0
        %2109 = vmatprep.mubr.bf16.mxu0 0
        %2110 = vmatmul.mubr.bf16.gmra.mrb[0].mxu0 %v2021
        %v2111 = vpop.f32.mrb[0].mxu0
        %v2112 = vadd.f32 0.0, %v2111
        %v2113 = vpop.f32.mrb[0].mxu0
        %v2114 = vpop.f32.mrb[0].mxu0
        %v2115 = vadd.f32 0.0, %v2114
        %v2116 = vpop.f32.mrb[0].mxu0
        %2117 = vmatprep.mubr.bf16.mxu0 0
        %2118 = vmatmul.mubr.bf16.gmra.mrb[0].mxu0 %v2022
        %v2119 = vpop.f32.mrb[0].mxu0
        %v2120 = vadd.f32 0.0, %v2119
        %v2121 = vpop.f32.mrb[0].mxu0
        %v2122 = vpop.f32.mrb[0].mxu0
        %v2123 = vadd.f32 0.0, %v2122
        %v2124 = vpop.f32.mrb[0].mxu0
        %2125 = vmatprep.mubr.bf16.mxu0 0
        %2126 = vmatmul.mubr.bf16.gmra.mrb[0].mxu0 %v2023
        %v2127 = vpop.f32.mrb[0].mxu0
        %v2128 = vadd.f32 0.0, %v2127
        %v2129 = vpop.f32.mrb[0].mxu0
        %v2130 = vpop.f32.mrb[0].mxu0
        %v2131 = vadd.f32 0.0, %v2130
        %v2132 = vpop.f32.mrb[0].mxu0
        %2133 = vmatprep.mubr.bf16.mxu0 0
        %2134 = vmatmul.mubr.bf16.gmra.mrb[0].mxu0 %v2024
        %v2135 = vpop.f32.mrb[0].mxu0
        %v2136 = vadd.f32 0.0, %v2135
        %v2137 = vpop.f32.mrb[0].mxu0
        %v2138 = vpop.f32.mrb[0].mxu0
        %v2139 = vadd.f32 0.0, %v2138
        %v2140 = vpop.f32.mrb[0].mxu0
        %2141 = vdwg.mxu0
        %v2142 = vld [vmem:[%s368] sm:$0xf]
        %v2143 = vld [vmem:[%s368 + $0x4] sm:$0xf]
        %v2144 = vld [vmem:[%s368 + $0x8] sm:$0xf]
        %v2145 = vld [vmem:[%s368 + $0xc] sm:$0xf]
        %v2146 = vld [vmem:[%s368 + $0x10] sm:$0xf]
        %v2147 = vld [vmem:[%s368 + $0x14] sm:$0xf]
        %v2148 = vld [vmem:[%s368 + $0x18] sm:$0xf]
        %v2149 = vld [vmem:[%s368 + $0x1c] sm:$0xf]
        %v2150 = vld [vmem:[#allocation6] sm:$0xf]
        %v2151 = vld [vmem:[#allocation6 + $0x4] sm:$0xf]
        %v2152 = vld [vmem:[#allocation6 + $0x8] sm:$0xf]
        %v2153 = vld [vmem:[#allocation6 + $0xc] sm:$0xf]
        %v2154 = vld [vmem:[#allocation6 + $0x10] sm:$0xf]
        %v2155 = vld [vmem:[#allocation6 + $0x14] sm:$0xf]
        %v2156 = vld [vmem:[#allocation6 + $0x18] sm:$0xf]
        %v2157 = vld [vmem:[#allocation6 + $0x1c] sm:$0xf]
        %v2158 = vld [vmem:[#allocation6 + $0x20] sm:$0xf]
        %v2159 = vld [vmem:[#allocation6 + $0x24] sm:$0xf]
        %v2160 = vld [vmem:[#allocation6 + $0x28] sm:$0xf]
        %v2161 = vld [vmem:[#allocation6 + $0x2c] sm:$0xf]
        %v2162 = vld [vmem:[#allocation6 + $0x30] sm:$0xf]
        %v2163 = vld [vmem:[#allocation6 + $0x34] sm:$0xf]
        %v2164 = vld [vmem:[#allocation6 + $0x38] sm:$0xf]
        %v2165 = vld [vmem:[#allocation6 + $0x3c] sm:$0xf]
        %v2174 = vunpack.c.l.b16 %v2142
        %v2175 = vunpack.c.l.b16 %v2143
        %v2176 = vunpack.c.l.b16 %v2144
        %v2177 = vunpack.c.l.b16 %v2145
        %v2178 = vunpack.c.l.b16 %v2146
        %v2179 = vunpack.c.l.b16 %v2147
        %v2180 = vunpack.c.l.b16 %v2148
        %v2181 = vunpack.c.l.b16 %v2149
        %v2182 = vpack.c.b16 %v2175, %v2174
        %v2183 = vpack.c.b16 %v2177, %v2176
        %v2184 = vpack.c.b16 %v2179, %v2178
        %v2185 = vpack.c.b16 %v2181, %v2180
        %v2206 = vunpack.c.l.b16 %v2150
        %v2207 = vunpack.c.l.b16 %v2151
        %v2208 = vunpack.c.l.b16 %v2152
        %v2209 = vunpack.c.l.b16 %v2153
        %v2210 = vunpack.c.l.b16 %v2154
        %v2211 = vunpack.c.l.b16 %v2155
        %v2212 = vunpack.c.l.b16 %v2156
        %v2213 = vunpack.c.l.b16 %v2157
        %v2214 = vunpack.c.l.b16 %v2158
        %v2215 = vunpack.c.l.b16 %v2159
        %v2216 = vunpack.c.l.b16 %v2160
        %v2217 = vunpack.c.l.b16 %v2161
        %v2218 = vunpack.c.l.b16 %v2162
        %v2219 = vunpack.c.l.b16 %v2163
        %v2220 = vunpack.c.l.b16 %v2164
        %v2221 = vunpack.c.l.b16 %v2165
        %v2222 = vpack.c.b16 %v2207, %v2206
        %v2223 = vpack.c.b16 %v2209, %v2208
        %v2224 = vpack.c.b16 %v2211, %v2210
        %v2225 = vpack.c.b16 %v2213, %v2212
        %v2226 = vpack.c.b16 %v2215, %v2214
        %v2227 = vpack.c.b16 %v2217, %v2216
        %v2228 = vpack.c.b16 %v2219, %v2218
        %v2229 = vpack.c.b16 %v2221, %v2220
        %2238 = vmatprep.subr.bf16.mxu0 0
        %2239 = vmatpush1.bf16.msra.mxu0 %v2222
        %2240 = vmatprep.subr.bf16.mxu0 0
        %2241 = vmatpush1.bf16.msra.mxu0 %v2223
        %2242 = vmatprep.subr.bf16.mxu0 0
        %2243 = vmatpush1.bf16.msra.mxu0 %v2224
        %2244 = vmatprep.subr.bf16.mxu0 0
        %2245 = vmatpush1.bf16.msra.mxu0 %v2225
        %2246 = vmatprep.subr.bf16.mxu0 0
        %2247 = vmatpush1.bf16.msra.mxu0 %v2226
        %2248 = vmatprep.subr.bf16.mxu0 0
        %2249 = vmatpush1.bf16.msra.mxu0 %v2227
        %2250 = vmatprep.subr.bf16.mxu0 0
        %2251 = vmatpush1.bf16.msra.mxu0 %v2228
        %2252 = vmatprep.subr.bf16.mxu0 0
        %2253 = vmatpush1.bf16.msra.mxu0 %v2229
        %2254 = vmatprep.subr.bf16.mxu0 0
        %2255 = vmatpush1.bf16.msra.mxu0 0
        %2256 = vmatprep.subr.bf16.mxu0 0
        %2257 = vmatpush1.bf16.msra.mxu0 0
        %2258 = vmatprep.subr.bf16.mxu0 0
        %2259 = vmatpush1.bf16.msra.mxu0 0
        %2260 = vmatprep.subr.bf16.mxu0 0
        %2261 = vmatpush1.bf16.msra.mxu0 0
        %2262 = vmatprep.subr.bf16.mxu0 0
        %2263 = vmatpush1.bf16.msra.mxu0 0
        %2264 = vmatprep.subr.bf16.mxu0 0
        %2265 = vmatpush1.bf16.msra.mxu0 0
        %2266 = vmatprep.subr.bf16.mxu0 0
        %2267 = vmatpush1.bf16.msra.mxu0 0
        %2268 = vmatprep.subr.bf16.mxu0 0
        %2269 = vmatpush1.bf16.msra.mxu0 0
        %2270 = vmatprep.mubr.bf16.mxu0 0
        %2271 = vmatmul.mubr.bf16.gmra.mrb[0].mxu0 %v2182
        %v2272 = vpop.f32.mrb[0].mxu0
        %v2273 = vadd.f32 0.0, %v2272
        %v2274 = vpop.f32.mrb[0].mxu0
        %v2275 = vpop.f32.mrb[0].mxu0
        %v2276 = vadd.f32 0.0, %v2275
        %v2277 = vpop.f32.mrb[0].mxu0
        %2278 = vmatprep.mubr.bf16.mxu0 0
        %2279 = vmatmul.mubr.bf16.gmra.mrb[0].mxu0 %v2183
        %v2280 = vpop.f32.mrb[0].mxu0
        %v2281 = vadd.f32 0.0, %v2280
        %v2282 = vpop.f32.mrb[0].mxu0
        %v2283 = vpop.f32.mrb[0].mxu0
        %v2284 = vadd.f32 0.0, %v2283
        %v2285 = vpop.f32.mrb[0].mxu0
        %2286 = vmatprep.mubr.bf16.mxu0 0
        %2287 = vmatmul.mubr.bf16.gmra.mrb[0].mxu0 %v2184
        %v2288 = vpop.f32.mrb[0].mxu0
        %v2289 = vadd.f32 0.0, %v2288
        %v2290 = vpop.f32.mrb[0].mxu0
        %v2291 = vpop.f32.mrb[0].mxu0
        %v2292 = vadd.f32 0.0, %v2291
        %v2293 = vpop.f32.mrb[0].mxu0
        %2294 = vmatprep.mubr.bf16.mxu0 0
        %2295 = vmatmul.mubr.bf16.gmra.mrb[0].mxu0 %v2185
        %v2296 = vpop.f32.mrb[0].mxu0
        %v2297 = vadd.f32 0.0, %v2296
        %v2298 = vpop.f32.mrb[0].mxu0
        %v2299 = vpop.f32.mrb[0].mxu0
        %v2300 = vadd.f32 0.0, %v2299
        %v2301 = vpop.f32.mrb[0].mxu0
        %2302 = vdwg.mxu0
        %v2303 = vmul.f32 %v2112, %v2112
        %v2304 = vmul.f32 %v2115, %v2115
        %v2305 = vmul.f32 %v2120, %v2120
        %v2306 = vmul.f32 %v2123, %v2123
        %v2307 = vmul.f32 %v2128, %v2128
        %v2308 = vmul.f32 %v2131, %v2131
        %v2309 = vmul.f32 %v2136, %v2136
        %v2310 = vmul.f32 %v2139, %v2139
        %2311 = vadd.xlane.f32.xlu0 %v2303
        %v2312 = vpop.xlane.xlu0 %2311
        %2313 = vadd.xlane.f32.xlu0 %v2304
        %v2314 = vpop.xlane.xlu0 %2313
        %2315 = vadd.xlane.f32.xlu0 %v2305
        %v2316 = vpop.xlane.xlu0 %2315
        %2317 = vadd.xlane.f32.xlu0 %v2306
        %v2318 = vpop.xlane.xlu0 %2317
        %2319 = vadd.xlane.f32.xlu0 %v2307
        %v2320 = vpop.xlane.xlu0 %2319
        %2321 = vadd.xlane.f32.xlu0 %v2308
        %v2322 = vpop.xlane.xlu0 %2321
        %2323 = vadd.xlane.f32.xlu0 %v2309
        %v2324 = vpop.xlane.xlu0 %2323
        %2325 = vadd.xlane.f32.xlu0 %v2310
        %v2326 = vpop.xlane.xlu0 %2325
        %v2327 = vmax.f32 %v2312, 1e-24
        %v2328 = vmax.f32 %v2314, 1e-24
        %v2329 = vmax.f32 %v2316, 1e-24
        %v2330 = vmax.f32 %v2318, 1e-24
        %v2331 = vmax.f32 %v2320, 1e-24
        %v2332 = vmax.f32 %v2322, 1e-24
        %v2333 = vmax.f32 %v2324, 1e-24
        %v2334 = vmax.f32 %v2326, 1e-24
        %v2335 = vrsqrt.pop %v2327
        %v2336 = vrsqrt.pop %v2328
        %v2337 = vrsqrt.pop %v2329
        %v2338 = vrsqrt.pop %v2330
        %v2339 = vrsqrt.pop %v2331
        %v2340 = vrsqrt.pop %v2332
        %v2341 = vrsqrt.pop %v2333
        %v2342 = vrsqrt.pop %v2334
        %v2343 = vmul.f32 %v2112, %v2335
        %v2344 = vmul.f32 %v2115, %v2336
        %v2345 = vmul.f32 %v2120, %v2337
        %v2346 = vmul.f32 %v2123, %v2338
        %v2347 = vmul.f32 %v2128, %v2339
        %v2348 = vmul.f32 %v2131, %v2340
        %v2349 = vmul.f32 %v2136, %v2341
        %v2350 = vmul.f32 %v2139, %v2342
        %v2351 = vmul.f32 %v2273, %v2273
        %v2352 = vmul.f32 %v2276, %v2276
        %v2353 = vmul.f32 %v2281, %v2281
        %v2354 = vmul.f32 %v2284, %v2284
        %v2355 = vmul.f32 %v2289, %v2289
        %v2356 = vmul.f32 %v2292, %v2292
        %v2357 = vmul.f32 %v2297, %v2297
        %v2358 = vmul.f32 %v2300, %v2300
        %2359 = vadd.xlane.f32.xlu0 %v2351
        %v2360 = vpop.xlane.xlu0 %2359
        %2361 = vadd.xlane.f32.xlu0 %v2352
        %v2362 = vpop.xlane.xlu0 %2361
        %2363 = vadd.xlane.f32.xlu0 %v2353
        %v2364 = vpop.xlane.xlu0 %2363
        %2365 = vadd.xlane.f32.xlu0 %v2354
        %v2366 = vpop.xlane.xlu0 %2365
        %2367 = vadd.xlane.f32.xlu0 %v2355
        %v2368 = vpop.xlane.xlu0 %2367
        %2369 = vadd.xlane.f32.xlu0 %v2356
        %v2370 = vpop.xlane.xlu0 %2369
        %2371 = vadd.xlane.f32.xlu0 %v2357
        %v2372 = vpop.xlane.xlu0 %2371
        %2373 = vadd.xlane.f32.xlu0 %v2358
        %v2374 = vpop.xlane.xlu0 %2373
        %v2375 = vmax.f32 %v2360, 1e-24
        %v2376 = vmax.f32 %v2362, 1e-24
        %v2377 = vmax.f32 %v2364, 1e-24
        %v2378 = vmax.f32 %v2366, 1e-24
        %v2379 = vmax.f32 %v2368, 1e-24
        %v2380 = vmax.f32 %v2370, 1e-24
        %v2381 = vmax.f32 %v2372, 1e-24
        %v2382 = vmax.f32 %v2374, 1e-24
        %v2383 = vrsqrt.pop %v2375
        %v2384 = vrsqrt.pop %v2376
        %v2385 = vrsqrt.pop %v2377
        %v2386 = vrsqrt.pop %v2378
        %v2387 = vrsqrt.pop %v2379
        %v2388 = vrsqrt.pop %v2380
        %v2389 = vrsqrt.pop %v2381
        %v2390 = vrsqrt.pop %v2382
        %v2391 = vmul.f32 %v2273, %v2383
        %v2392 = vmul.f32 %v2276, %v2384
        %v2393 = vmul.f32 %v2281, %v2385
        %v2394 = vmul.f32 %v2284, %v2386
        %v2395 = vmul.f32 %v2289, %v2387
        %v2396 = vmul.f32 %v2292, %v2388
        %v2397 = vmul.f32 %v2297, %v2389
        %v2398 = vmul.f32 %v2300, %v2390
        %v2399 = vld [vmem:[#allocation2] sm:$0x1]
        %s2400 = vtos %v2399
        %v2401 = vstv %s2400
        %v2402 = vmul.f32 %v2391, %v2401
        %v2403 = vmul.f32 %v2392, %v2401
        %v2404 = vmul.f32 %v2393, %v2401
        %v2405 = vmul.f32 %v2394, %v2401
        %v2406 = vmul.f32 %v2395, %v2401
        %v2407 = vmul.f32 %v2396, %v2401
        %v2408 = vmul.f32 %v2397, %v2401
        %v2409 = vmul.f32 %v2398, %v2401
        %v2410 = vpack.c.bf16 %v2344, %v2343
        %v2411 = vpack.c.bf16 %v2346, %v2345
        %v2412 = vpack.c.bf16 %v2348, %v2347
        %v2413 = vpack.c.bf16 %v2350, %v2349
        %v2418 = vunpack.c.l.b16 %v2410
        %v2419 = vunpack.c.h.b16 %v2410
        %v2420 = vunpack.c.l.b16 %v2411
        %v2421 = vunpack.c.h.b16 %v2411
        %v2422 = vunpack.c.l.b16 %v2412
        %v2423 = vunpack.c.h.b16 %v2412
        %v2424 = vunpack.c.l.b16 %v2413
        %v2425 = vunpack.c.h.b16 %v2413
        %v2426 = vpack.c.b16 %v2418, %v2418
        %v2427 = vpack.c.b16 %v2419, %v2419
        %v2428 = vpack.c.b16 %v2420, %v2420
        %v2429 = vpack.c.b16 %v2421, %v2421
        %v2430 = vpack.c.b16 %v2422, %v2422
        %v2431 = vpack.c.b16 %v2423, %v2423
        %v2432 = vpack.c.b16 %v2424, %v2424
        %v2433 = vpack.c.b16 %v2425, %v2425
        %2442 = vst [vmem:[%s349] sm:$0xf] %v2426
        %2443 = vst [vmem:[%s349 + $0x4] sm:$0xf] %v2427
        %2444 = vst [vmem:[%s349 + $0x8] sm:$0xf] %v2428
        %2445 = vst [vmem:[%s349 + $0xc] sm:$0xf] %v2429
        %2446 = vst [vmem:[%s349 + $0x10] sm:$0xf] %v2430
        %2447 = vst [vmem:[%s349 + $0x14] sm:$0xf] %v2431
        %2448 = vst [vmem:[%s349 + $0x18] sm:$0xf] %v2432
        %2449 = vst [vmem:[%s349 + $0x1c] sm:$0xf] %v2433
        %v2450 = vpack.c.bf16 %v2403, %v2402
        %v2451 = vpack.c.bf16 %v2405, %v2404
        %v2452 = vpack.c.bf16 %v2407, %v2406
        %v2453 = vpack.c.bf16 %v2409, %v2408
        %v2458 = vunpack.c.l.b16 %v2450
        %v2459 = vunpack.c.h.b16 %v2450
        %v2460 = vunpack.c.l.b16 %v2451
        %v2461 = vunpack.c.h.b16 %v2451
        %v2462 = vunpack.c.l.b16 %v2452
        %v2463 = vunpack.c.h.b16 %v2452
        %v2464 = vunpack.c.l.b16 %v2453
        %v2465 = vunpack.c.h.b16 %v2453
        %v2466 = vpack.c.b16 %v2458, %v2458
        %v2467 = vpack.c.b16 %v2459, %v2459
        %v2468 = vpack.c.b16 %v2460, %v2460
        %v2469 = vpack.c.b16 %v2461, %v2461
        %v2470 = vpack.c.b16 %v2462, %v2462
        %v2471 = vpack.c.b16 %v2463, %v2463
        %v2472 = vpack.c.b16 %v2464, %v2464
        %v2473 = vpack.c.b16 %v2465, %v2465
        %2482 = vst [vmem:[%s356] sm:$0xf] %v2466
        %2483 = vst [vmem:[%s356 + $0x4] sm:$0xf] %v2467
        %2484 = vst [vmem:[%s356 + $0x8] sm:$0xf] %v2468
        %2485 = vst [vmem:[%s356 + $0xc] sm:$0xf] %v2469
        %2486 = vst [vmem:[%s356 + $0x10] sm:$0xf] %v2470
        %2487 = vst [vmem:[%s356 + $0x14] sm:$0xf] %v2471
        %2488 = vst [vmem:[%s356 + $0x18] sm:$0xf] %v2472
        %2489 = vst [vmem:[%s356 + $0x1c] sm:$0xf] %v2473
        %s2490 = sand.u32 %s180, 1
        %s2491 = scalar_lea.sflag [#allocation5], %s2490
        %s2492 = sand.u32 %s180, 1
        %s2493 = smul.addr %s2492, 32
        %s2494 = scalar_lea.vmem [#allocation8], %s2493
        %s2495 = sand.u32 %s206, 1
        %s2496 = scalar_lea.sflag [#allocation10], %s2495
        %s2497 = sand.u32 %s206, 1
        %s2498 = smul.addr %s2497, 32
        %s2499 = scalar_lea.vmem [#allocation9], %s2498
        // Predicated region
        $region53: #{tpu_custom_call.1} parent=43 // pred_check
          %p2500 = pneg %p190
        $region54: #{tpu_custom_call.1} parent=43 // pred_check_branch
          %2502 = sbr.rel (%p2500) target = $region56
        $region55: #{tpu_custom_call.1} parent=43 // pred_region
          %s2503 = smul.u32 8, %s31
          %s2505 = ssub.s32 512, 512
          %2506 = vsyncadd %s2491, %s2505
          %s2507 = smul.addr %s2503, 64
          %s2508 = scalar_lea.hbm %s6, %s2507
          %s2509 = sshll.u32 %s2494, 4
          %s2510 = int_to_ptr.vmem [resolvable:$true] %s2509
          %2515 = dma.vmem_to_hbm [thread:$0]  %s2510, 512, %s2508, %s2491, 64, 64, 4
        $region56: #{tpu_custom_call.1} parent=43 // pred_fallthru
          _
        // Predicated region
        $region57: #{tpu_custom_call.1} parent=43 // pred_check
          %p2516 = pneg %p216
        $region58: #{tpu_custom_call.1} parent=43 // pred_check_branch
          %2518 = sbr.rel (%p2516) target = $region60
        $region59: #{tpu_custom_call.1} parent=43 // pred_region
          %s2519 = smul.u32 8, %s31
          %s2521 = ssub.s32 512, 512
          %2522 = vsyncadd %s2496, %s2521
          %s2523 = smul.addr %s2519, 64
          %s2524 = scalar_lea.hbm %s7, %s2523
          %s2525 = sshll.u32 %s2499, 4
          %s2526 = int_to_ptr.vmem [resolvable:$true] %s2525
          %2531 = dma.vmem_to_hbm [thread:$0]  %s2526, 512, %s2524, %s2496, 64, 64, 4
        $region60: #{tpu_custom_call.1} parent=43 // pred_fallthru
          _
      $region44: #{tpu_custom_call.1} parent=5 // pred_fallthru
        _
      %p2532 = scmp.le.s32.totalorder 2, %s26
      // Predicated region
      $region61: #{tpu_custom_call.1} parent=5 // pred_check
        %p2533 = pneg %p2532
      $region62: #{tpu_custom_call.1} parent=5 // pred_check_branch
        %2535 = sbr.rel (%p2533) target = $region64
      $region63: #{tpu_custom_call.1} parent=5 // pred_region
        %s2536 = ssub.s32 %s26, 2
        // Predicated region
        $region65: #{tpu_custom_call.1} parent=63 // pred_check
          %p2537 = pneg %p196
        $region66: #{tpu_custom_call.1} parent=63 // pred_check_branch
          %2539 = sbr.rel (%p2537) target = $region68
        $region67: #{tpu_custom_call.1} parent=63 // pred_region
          %s2540 = sand.u32 %s181, 1
          %s2541 = scalar_lea.sflag [#allocation5], %s2540
          %s2542 = sand.u32 %s181, 1
          %s2543 = smul.addr %s2542, 32
          %s2544 = scalar_lea.vmem [#allocation8], %s2543
          %2545 = dma.done %s2541, 512
        $region68: #{tpu_custom_call.1} parent=63 // pred_fallthru
          _
        // Predicated region
        $region69: #{tpu_custom_call.1} parent=63 // pred_check
          %p2546 = pneg %p222
        $region70: #{tpu_custom_call.1} parent=63 // pred_check_branch
          %2548 = sbr.rel (%p2546) target = $region72
        $region71: #{tpu_custom_call.1} parent=63 // pred_region
          %s2549 = sand.u32 %s207, 1
          %s2550 = scalar_lea.sflag [#allocation10], %s2549
          %s2551 = sand.u32 %s207, 1
          %s2552 = smul.addr %s2551, 32
          %s2553 = scalar_lea.vmem [#allocation9], %s2552
          %2554 = dma.done %s2550, 512
        $region72: #{tpu_custom_call.1} parent=63 // pred_fallthru
          _
      $region64: #{tpu_custom_call.1} parent=5 // pred_fallthru
        _
    $region6: #{tpu_custom_call.1} parent=1 // loop_footer
      %s30 = sadd.s32 1, %s26
    $region7: #{tpu_custom_call.1} parent=1 // loop_footer_branch
      %25 = sbr.rel target = $region3
    $region8: #{tpu_custom_call.1} parent=1 // loop_exit
      _
    %2555 = vsyncpa [#allocation4], 1
    %s2556 = scalar_lea.sflag [#allocation4], 1
    %2557 = vsyncpa %s2556, 1
    %2558 = vsyncpa [#allocation7], 1
    %2559 = vsyncpa [#allocation5], 1
    %s2560 = scalar_lea.sflag [#allocation5], 1
    %2561 = vsyncpa %s2560, 1
    %2562 = vsyncpa [#allocation10], 1
    %s2563 = scalar_lea.sflag [#allocation10], 1
    %2564 = vsyncpa %s2563, 1

</llo_original>
